<compile_context>
chip_gen: v6e
topology: v6e:2x2x1
jax: 0.10.0
libtpu: 0.0.40
codegen_flags: <defaults>
</compile_context>

<pallas_src>
import functools

import numpy as np
import jax
import jax.numpy as jnp
from jax.experimental import pallas as pl
from jax.experimental.pallas import tpu as pltpu


# ----------------------- block-sparse propagation kernel ---------------------
def _bs_matmul_kernel(kidx_ref, kcnt_ref, a_ref, e_ref, o_ref, acc_ref):
    """One (tm, D) output row-tile; s walks the (compacted) nonzero k-tiles."""
    i = pl.program_id(0)
    s = pl.program_id(1)

    @pl.when(s == 0)
    def _():
        acc_ref[...] = jnp.zeros_like(acc_ref)

    # Padded steps repeat the last valid k-tile index (DMA dedups); skip compute.
    @pl.when(s < kcnt_ref[i])
    def _():
        acc_ref[...] += jnp.dot(a_ref[...], e_ref[...],
                                preferred_element_type=jnp.float32)

    @pl.when(s == pl.num_programs(1) - 1)
    def _():
        o_ref[...] = acc_ref[...].astype(o_ref.dtype)


def graph_matmul(graph_bf16, kidx, kcnt, e_bf16, *, tm, tk):
    """E_next = A @ E with block-sparse skipping of all-zero (tm, tk) tiles."""
    Mp, Kp = graph_bf16.shape
    Kp2, D = e_bf16.shape
    assert Kp == Kp2 and Mp % tm == 0 and Kp % tk == 0
    assert D % 128 == 0  # TODO(synk): pad hidden dim if it is not a lane multiple
    ni = Mp // tm
    S = kidx.shape[1]          # max nonzero k-tiles per row-tile (static)

    return pl.pallas_call(
        _bs_matmul_kernel,
        out_shape=jax.ShapeDtypeStruct((Mp, D), jnp.float32),
        grid_spec=pltpu.PrefetchScalarGridSpec(
            num_scalar_prefetch=2,                      # kidx, kcnt -> SMEM
            grid=(ni, S),
            in_specs=[
                # A tile: data-dependent column-tile index from prefetch table.
                pl.BlockSpec((tm, tk), lambda i, s, kidx, kcnt: (i, kidx[i, s])),
                # E panel: same nonzero k-tile, full lane width D (no j axis).
                pl.BlockSpec((tk, D), lambda i, s, kidx, kcnt: (kidx[i, s], 0)),
            ],
            out_specs=pl.BlockSpec((tm, D), lambda i, s, kidx, kcnt: (i, 0)),
            scratch_shapes=[pltpu.VMEM((tm, D), jnp.float32)],
        ),
        compiler_params=pltpu.CompilerParams(
            dimension_semantics=("parallel", "arbitrary")),
    )(kidx, kcnt, graph_bf16, e_bf16)


def build_block_sparse_graph(graph, *, tm, tk):
    """Host-side, once per training run (the adjacency is static):
    pads A to tile multiples, casts to bf16 (halves HBM bytes of the dominant
    stream), and records the nonzero column-tile list per row-tile."""
    g = np.asarray(graph, dtype=np.float32)
    M, K = g.shape
    Mp = ((M + tm - 1) // tm) * tm
    Kp = ((K + tk - 1) // tk) * tk
    if (Mp, Kp) != (M, K):
        gp = np.zeros((Mp, Kp), np.float32)
        gp[:M, :K] = g
        g = gp
    ni, nk = Mp // tm, Kp // tk
    nz = np.any(g.reshape(ni, tm, nk, tk) != 0.0, axis=(1, 3))   # (ni, nk)
    kcnt = nz.sum(axis=1).astype(np.int32)                        # (ni,)
    S = max(int(kcnt.max()), 1)
    kidx = np.zeros((ni, S), dtype=np.int32)
    for i in range(ni):
        cols = np.nonzero(nz[i])[0]
        if cols.size:
            kidx[i, :cols.size] = cols
            kidx[i, cols.size:] = cols[-1]   # repeat last: DMA dedup, compute skipped
    return (jnp.asarray(g, dtype=jnp.bfloat16),
            jnp.asarray(kidx), jnp.asarray(kcnt))


# ------------------------------- scoring kernel ------------------------------
def _score_kernel(alpha_ref, u_ref, i_ref, o_ref):
    # alpha_ref: SMEM (L,) f32 (passed as an input — not a captured constant)
    # u_ref, i_ref: (L, TB, D) gathered per-layer embeddings; o_ref: (1, TB)
    prod = u_ref[...] * i_ref[...]                    # (L, TB, D)
    gamma = jnp.sum(prod, axis=-1)                    # (L, TB)
    loss = jnp.zeros((1, gamma.shape[1]), jnp.float32)
    for l in range(gamma.shape[0]):                   # static unroll over layers
        loss = loss + gamma[l:l + 1, :] * alpha_ref[l]
    o_ref[...] = jax.nn.sigmoid(loss)                 # lane-dense (1, TB)


def lr_lightgcn_score(alpha, u_stack, i_stack, *, tb=None):
    L, B, D = u_stack.shape
    if tb is None:
        tb = B if B <= 512 else 512
    assert B % tb == 0
    out = pl.pallas_call(
        _score_kernel,
        out_shape=jax.ShapeDtypeStruct((1, B), jnp.float32),
        grid_spec=pltpu.PrefetchScalarGridSpec(
            num_scalar_prefetch=0,
            grid=(B // tb,),
            in_specs=[
                pl.BlockSpec(memory_space=pltpu.MemorySpace.SMEM),   # alpha
                pl.BlockSpec((L, tb, D), lambda b: (0, b, 0)),
                pl.BlockSpec((L, tb, D), lambda b: (0, b, 0)),
            ],
            out_specs=pl.BlockSpec((1, tb), lambda b: (0, b)),
        ),
        compiler_params=pltpu.CompilerParams(
            dimension_semantics=("parallel",)),
    )(alpha, u_stack, i_stack)
    return out[0]


# ------------------------------ forward wrapper -------------------------------
def lr_lightgcn_forward(user_weight, item_weight, graph_bf16, kidx, kcnt,
                        alpha, user_idx, item_idx, *, n_layers_total, tm, tk):
    """Reproduces LR_LightGCN.forward(user, item)."""
    user_num = user_weight.shape[0]
    e = jnp.concatenate([user_weight, item_weight], axis=0)     # (N, D) f32
    N = e.shape[0]
    Kp = graph_bf16.shape[1]

    def gather(e_layer):
        u = jnp.take(e_layer, user_idx, axis=0)                 # (B, D)
        i = jnp.take(e_layer, user_num + item_idx, axis=0)      # (B, D)
        return u, i

    u0, i0 = gather(e)
    u_layers, i_layers = [u0], [i0]
    for _ in range(1, n_layers_total):
        e_in = e.astype(jnp.bfloat16)                           # bf16 matmul inputs
        if Kp != N:
            e_in = jnp.pad(e_in, ((0, Kp - N), (0, 0)))
        e = graph_matmul(graph_bf16, kidx, kcnt, e_in, tm=tm, tk=tk)[:N]
        u, i = gather(e)
        u_layers.append(u)
        i_layers.append(i)

    u_stack = jnp.stack(u_layers, axis=0)                       # (L, B, D)
    i_stack = jnp.stack(i_layers, axis=0)                       # (L, B, D)
    return lr_lightgcn_score(alpha, u_stack, i_stack)           # (B,)


# ---------------------------- reference (pure JAX) ----------------------------
def _reference_forward(user_weight, item_weight, graph, alpha_k,
                       user_idx, item_idx, n_layers_total):
    user_num = user_weight.shape[0]
    e = jnp.concatenate([user_weight, item_weight], axis=0)
    all_emb = [e]
    for _ in range(1, n_layers_total):
        e = graph @ e
        all_emb.append(e)
    loss = jnp.zeros(user_idx.shape, jnp.float32)
    for layer in range(n_layers_total):
        ue = all_emb[layer][user_idx]
        ie = all_emb[layer][user_num + item_idx]
        loss = loss + jnp.sum(ue * ie, axis=1) * alpha_k[layer]
    return jax.nn.sigmoid(loss)


# -------------------------------------- main ----------------------------------
if __name__ == "__main__":
    user_num, item_num = 128, 128
    N = user_num + item_num
    hidden_dim = 128
    n_layers = 2                      # module arg; total layers L = n_layers + 1
    L = n_layers + 1
    alpha_k = [1.0 / L] * L
    B = 128
    # Small tiles at demo size so the all-zero bipartite diagonal blocks are
    # actually skipped and the parallel row axis has >= 2 blocks (v7x megacore).
    # At production N use 256-512 tiles (still well under default scoped VMEM).
    TM = TK = 128

    key = jax.random.PRNGKey(0)
    k_r, k_u, k_i, k_uu, k_ii = jax.random.split(key, 5)

    # Deterministic synthetic normalized adjacency (D^-1/2 A D^-1/2, bipartite).
    R = (jax.random.uniform(k_r, (user_num, item_num)) < 0.05).astype(jnp.float32)
    A = jnp.zeros((N, N), jnp.float32)
    A = A.at[:user_num, user_num:].set(R)
    A = A.at[user_num:, :user_num].set(R.T)
    deg = jnp.clip(A.sum(axis=1), 1.0, None)
    d_is = 1.0 / jnp.sqrt(deg)
    graph = A * d_is[:, None] * d_is[None, :]

    # Xavier-uniform embedding init (gain=1), as in the module's __init__.
    def xavier(k, fan_out, fan_in):
        bound = (6.0 / (fan_in + fan_out)) ** 0.5
        return jax.random.uniform(k, (fan_out, fan_in), jnp.float32,
                                  minval=-bound, maxval=bound)

    user_weight = xavier(k_u, user_num, hidden_dim)
    item_weight = xavier(k_i, item_num, hidden_dim)
    user_idx = jax.random.randint(k_uu, (B,), 0, user_num, dtype=jnp.int32)
    item_idx = jax.random.randint(k_ii, (B,), 0, item_num, dtype=jnp.int32)

    # Static, one-time block-sparse preprocessing of the adjacency.
    graph_bf16, kidx, kcnt = build_block_sparse_graph(graph, tm=TM, tk=TK)
    alpha = jnp.asarray(alpha_k, dtype=jnp.float32)

    fwd = jax.jit(functools.partial(lr_lightgcn_forward,
                                    n_layers_total=L, tm=TM, tk=TK))
    out = fwd(user_weight, item_weight, graph_bf16, kidx, kcnt,
              alpha, user_idx, item_idx)
    out = jax.block_until_ready(out)

    ref = _reference_forward(user_weight, item_weight, graph, alpha_k,
                             user_idx, item_idx, L)
    assert out.shape == (B,)
    # bf16 propagation inputs => slightly looser tolerance vs the f32 reference.
    assert jnp.allclose(out, ref, atol=5e-3, rtol=0.0), \
        float(jnp.max(jnp.abs(out - ref)))

    print("KERNEL_OK")
</pallas_src>

<mosaic_0001>
module attributes {stable_mosaic.version = 11 : i64} {
  func.func @_bs_matmul_kernel(%arg0: i32, %arg1: i32, %arg2: memref<2x1xi32, #tpu.memory_space<smem>>, %arg3: memref<2xi32, #tpu.memory_space<smem>>, %arg4: memref<128x128xbf16, #tpu.memory_space<vmem>>, %arg5: memref<128x128xbf16, #tpu.memory_space<vmem>>, %arg6: memref<128x128xf32, #tpu.memory_space<vmem>>, %arg7: memref<128x128xf32, #tpu.memory_space<vmem>>) attributes {dimension_semantics = [#tpu.dimension_semantics<parallel>, #tpu.dimension_semantics<arbitrary>], iteration_bounds = array<i64: 2, 1>, scalar_prefetch = 2 : i64, scratch_operands = 1 : i64, tpu.core_type = #tpu.core_type<tc>, window_params = [{transform_indices = @transform_0, window_bounds = array<i64: 128, 128>}, {transform_indices = @transform_1, window_bounds = array<i64: 128, 128>}, {transform_indices = @transform_2, window_bounds = array<i64: 128, 128>}]} {
    %c0_i32 = arith.constant 0 : i32
    %0 = arith.cmpi eq, %arg1, %c0_i32 : i32
    %1 = arith.extui %0 : i1 to i32
    %c0_i32_0 = arith.constant 0 : i32
    %2 = arith.cmpi ne, %1, %c0_i32_0 : i32
    scf.if %2 {
      %cst = arith.constant 0.000000e+00 : f32
      %11 = vector.broadcast %cst : f32 to vector<128x128xf32>
      %c0 = arith.constant 0 : index
      %c0_4 = arith.constant 0 : index
      %12 = vector.load %arg7[%c0, %c0_4] : memref<128x128xf32, #tpu.memory_space<vmem>>, vector<128x128xf32>
      tpu.vector_store %arg7[%c0, %c0_4], %11 {strides = array<i32>} : memref<128x128xf32, #tpu.memory_space<vmem>>, vector<128x128xf32>,
    } else {
    }
    %3 = arith.index_cast %arg0 : i32 to index
    %4 = memref.load %arg3[%3] : memref<2xi32, #tpu.memory_space<smem>>
    %5 = arith.cmpi slt, %arg1, %4 : i32
    %6 = arith.extui %5 : i1 to i32
    %c0_i32_1 = arith.constant 0 : i32
    %7 = arith.cmpi ne, %6, %c0_i32_1 : i32
    scf.if %7 {
      %c0 = arith.constant 0 : index
      %c0_4 = arith.constant 0 : index
      %11 = vector.load %arg7[%c0, %c0_4] : memref<128x128xf32, #tpu.memory_space<vmem>>, vector<128x128xf32>
      %c0_5 = arith.constant 0 : index
      %c0_6 = arith.constant 0 : index
      %12 = vector.load %arg4[%c0_5, %c0_6] : memref<128x128xbf16, #tpu.memory_space<vmem>>, vector<128x128xbf16>
      %c0_7 = arith.constant 0 : index
      %c0_8 = arith.constant 0 : index
      %13 = vector.load %arg5[%c0_7, %c0_8] : memref<128x128xbf16, #tpu.memory_space<vmem>>, vector<128x128xbf16>
      %cst = arith.constant dense<0.000000e+00> : vector<128x128xf32>
      %14 = tpu.matmul %12, %13, %cst {dimension_numbers = #tpu.dot_dimension_numbers<[1], [0], [0], [1], [0, 0, 1, 1], [], []>} : vector<128x128xbf16>, vector<128x128xbf16>, vector<128x128xf32> -> vector<128x128xf32>
      %15 = arith.addf %11, %14 : vector<128x128xf32>
      %c0_9 = arith.constant 0 : index
      %c0_10 = arith.constant 0 : index
      %16 = vector.load %arg7[%c0_9, %c0_10] : memref<128x128xf32, #tpu.memory_space<vmem>>, vector<128x128xf32>
      tpu.vector_store %arg7[%c0_9, %c0_10], %15 {strides = array<i32>} : memref<128x128xf32, #tpu.memory_space<vmem>>, vector<128x128xf32>,
    } else {
    }
    %c0_i32_2 = arith.constant 0 : i32
    %8 = arith.cmpi eq, %arg1, %c0_i32_2 : i32
    %9 = arith.extui %8 : i1 to i32
    %c0_i32_3 = arith.constant 0 : i32
    %10 = arith.cmpi ne, %9, %c0_i32_3 : i32
    scf.if %10 {
      %c0 = arith.constant 0 : index
      %c0_4 = arith.constant 0 : index
      %11 = vector.load %arg7[%c0, %c0_4] : memref<128x128xf32, #tpu.memory_space<vmem>>, vector<128x128xf32>
      %c0_5 = arith.constant 0 : index
      %c0_6 = arith.constant 0 : index
      %12 = vector.load %arg6[%c0_5, %c0_6] : memref<128x128xf32, #tpu.memory_space<vmem>>, vector<128x128xf32>
      tpu.vector_store %arg6[%c0_5, %c0_6], %11 {strides = array<i32>} : memref<128x128xf32, #tpu.memory_space<vmem>>, vector<128x128xf32>,
    } else {
    }
    return
  }
  func.func @transform_0(%arg0: i32, %arg1: i32, %arg2: memref<2x1xi32, #tpu.memory_space<smem>>, %arg3: memref<2xi32, #tpu.memory_space<smem>>) -> (i32, i32) {
    %0 = arith.index_cast %arg0 : i32 to index
    %1 = arith.index_cast %arg1 : i32 to index
    %2 = memref.load %arg2[%0, %1] : memref<2x1xi32, #tpu.memory_space<smem>>
    %c0_i32 = arith.constant 0 : i32
    return %arg0, %2 : i32, i32
  }
  func.func @transform_1(%arg0: i32, %arg1: i32, %arg2: memref<2x1xi32, #tpu.memory_space<smem>>, %arg3: memref<2xi32, #tpu.memory_space<smem>>) -> (i32, i32) {
    %0 = arith.index_cast %arg0 : i32 to index
    %1 = arith.index_cast %arg1 : i32 to index
    %2 = memref.load %arg2[%0, %1] : memref<2x1xi32, #tpu.memory_space<smem>>
    %c0_i32 = arith.constant 0 : i32
    %c0_i32_0 = arith.constant 0 : i32
    return %2, %c0_i32 : i32, i32
  }
  func.func @transform_2(%arg0: i32, %arg1: i32, %arg2: memref<2x1xi32, #tpu.memory_space<smem>>, %arg3: memref<2xi32, #tpu.memory_space<smem>>) -> (i32, i32) {
    %c0_i32 = arith.constant 0 : i32
    %c0_i32_0 = arith.constant 0 : i32
    return %arg0, %c0_i32 : i32, i32
  }
}

module attributes {stable_mosaic.version = 11 : i64} {
  func.func @_score_kernel(%arg0: i32, %arg1: memref<3xf32, #tpu.memory_space<smem>>, %arg2: memref<3x128x128xf32, #tpu.memory_space<vmem>>, %arg3: memref<3x128x128xf32, #tpu.memory_space<vmem>>, %arg4: memref<1x128xf32, #tpu.memory_space<vmem>>) attributes {dimension_semantics = [#tpu.dimension_semantics<parallel>], iteration_bounds = array<i64: 1>, scalar_prefetch = 0 : i64, scratch_operands = 0 : i64, tpu.core_type = #tpu.core_type<tc>, window_params = [{transform_indices = @transform_0, window_bounds = array<i64: 3>}, {transform_indices = @transform_1, window_bounds = array<i64: 3, 128, 128>}, {transform_indices = @transform_2, window_bounds = array<i64: 3, 128, 128>}, {transform_indices = @transform_3, window_bounds = array<i64: 1, 128>}]} {
    %c0 = arith.constant 0 : index
    %c0_0 = arith.constant 0 : index
    %c0_1 = arith.constant 0 : index
    %0 = vector.load %arg2[%c0, %c0_0, %c0_1] : memref<3x128x128xf32, #tpu.memory_space<vmem>>, vector<3x128x128xf32>
    %c0_2 = arith.constant 0 : index
    %c0_3 = arith.constant 0 : index
    %c0_4 = arith.constant 0 : index
    %1 = vector.load %arg3[%c0_2, %c0_3, %c0_4] : memref<3x128x128xf32, #tpu.memory_space<vmem>>, vector<3x128x128xf32>
    %2 = arith.mulf %0, %1 : vector<3x128x128xf32>
    %cst = arith.constant dense<0.000000e+00> : vector<3x128xf32>
    %3 = vector.multi_reduction <add>, %2, %cst [2] : vector<3x128x128xf32> to vector<3x128xf32>
    %cst_5 = arith.constant 0.000000e+00 : f32
    %4 = vector.broadcast %cst_5 : f32 to vector<1x128xf32>
    %5 = vector.extract_strided_slice %3 {offsets = [0, 0], sizes = [1, 128], strides = [1, 1]} : vector<3x128xf32> to vector<1x128xf32>
    %c0_6 = arith.constant 0 : index
    %6 = memref.load %arg1[%c0_6] : memref<3xf32, #tpu.memory_space<smem>>
    %7 = vector.broadcast %6 : f32 to vector<1x128xf32>
    %8 = arith.mulf %5, %7 : vector<1x128xf32>
    %9 = arith.addf %4, %8 : vector<1x128xf32>
    %10 = vector.extract_strided_slice %3 {offsets = [1, 0], sizes = [1, 128], strides = [1, 1]} : vector<3x128xf32> to vector<1x128xf32>
    %c1 = arith.constant 1 : index
    %11 = memref.load %arg1[%c1] : memref<3xf32, #tpu.memory_space<smem>>
    %12 = vector.broadcast %11 : f32 to vector<1x128xf32>
    %13 = arith.mulf %10, %12 : vector<1x128xf32>
    %14 = arith.addf %9, %13 : vector<1x128xf32>
    %15 = vector.extract_strided_slice %3 {offsets = [2, 0], sizes = [1, 128], strides = [1, 1]} : vector<3x128xf32> to vector<1x128xf32>
    %c2 = arith.constant 2 : index
    %16 = memref.load %arg1[%c2] : memref<3xf32, #tpu.memory_space<smem>>
    %17 = vector.broadcast %16 : f32 to vector<1x128xf32>
    %18 = arith.mulf %15, %17 : vector<1x128xf32>
    %19 = arith.addf %14, %18 : vector<1x128xf32>
    %20 = arith.negf %19 : vector<1x128xf32>
    %21 = math.exp %20 : vector<1x128xf32>
    %cst_7 = arith.constant 1.000000e+00 : f32
    %22 = vector.broadcast %cst_7 : f32 to vector<1x128xf32>
    %23 = arith.addf %22, %21 : vector<1x128xf32>
    %24 = arith.divf %22, %23 : vector<1x128xf32>
    %c0_8 = arith.constant 0 : index
    %c0_9 = arith.constant 0 : index
    %25 = vector.load %arg4[%c0_8, %c0_9] : memref<1x128xf32, #tpu.memory_space<vmem>>, vector<1x128xf32>
    tpu.vector_store %arg4[%c0_8, %c0_9], %24 {strides = array<i32>} : memref<1x128xf32, #tpu.memory_space<vmem>>, vector<1x128xf32>,
    return
  }
  func.func @transform_0(%arg0: i32) -> i32 {
    %c0_i32 = arith.constant 0 : i32
    %c0_i32_0 = arith.constant 0 : i32
    return %c0_i32 : i32
  }
  func.func @transform_1(%arg0: i32) -> (i32, i32, i32) {
    %c0_i32 = arith.constant 0 : i32
    %c0_i32_0 = arith.constant 0 : i32
    %c0_i32_1 = arith.constant 0 : i32
    return %c0_i32, %arg0, %c0_i32_0 : i32, i32, i32
  }
  func.func @transform_2(%arg0: i32) -> (i32, i32, i32) {
    %c0_i32 = arith.constant 0 : i32
    %c0_i32_0 = arith.constant 0 : i32
    %c0_i32_1 = arith.constant 0 : i32
    return %c0_i32, %arg0, %c0_i32_0 : i32, i32, i32
  }
  func.func @transform_3(%arg0: i32) -> (i32, i32) {
    %c0_i32 = arith.constant 0 : i32
    %c0_i32_0 = arith.constant 0 : i32
    return %c0_i32, %arg0 : i32, i32
  }
}

</mosaic_0001>

<llo_original>
// kernel: lr_lightgcn_forward.3
$region0: #{lr_lightgcn_forward.3}
  #allocation0 [shape = 'u32[]', space=smem, size = 0x4, offset = 0x4, fixed_abs, tag = 'smem constant byte address 0x4 - core index']
  #allocation1 [shape = 'u32[144,128]{1,0:T(1,128)}', space=vmem, size = 0x12000, scoped, tag = 'internal scratch']
  #allocation2 [shape = 'f32[128,128]{1,0:T(8,128)}', space=vmem, size = 0x10000, scoped, tag = 'scratch operand']
  #allocation3 [shape = 's32[1]{0}', space=sflag, size = 0x4, scoped, tag = 'scoped memory for lr_lightgcn_forward.3']
  #allocation4 [shape = 'u8[1024]{0}', space=smem, size = 0x400, scoped, tag = 'prefetched SMEM operand 0']
  #allocation5 [shape = 'u8[512]{0}', space=smem, size = 0x200, scoped, tag = 'prefetched SMEM operand 1']
  %s0 = inlined_call_operand.vmem [shape: s32[2,1], index: 0, kind: input, shape index: {}]
  %s1 = inlined_call_operand.vmem [shape: s32[2], index: 1, kind: input, shape index: {}]
  %s2 = inlined_call_operand.vmem [shape: bf16[256,256], index: 2, kind: input, shape index: {}]
  %s3 = inlined_call_operand.vmem [shape: bf16[256,128], index: 3, kind: input, shape index: {}]
  %s4 = inlined_call_operand.vmem [shape: f32[256,128], index: 4, kind: output, shape index: {}]
  %s5 = sld [smem:[#allocation0]]
  $region94: #{lr_lightgcn_forward.3} parent=0
    _
  %s7 = ssub.s32 1, %s5
  %s8 = scalar_select 0, %s7, %s5
  %s9 = sshll.u32 %s0, 4
  %s10 = int_to_ptr.vmem [resolvable:$true] %s9
  %12 = dma.vmem_to_smem %s10, 32, [#allocation4], [#allocation3]
  %s13 = sshll.u32 %s1, 4
  %s14 = int_to_ptr.vmem [resolvable:$true] %s13
  %16 = dma.vmem_to_smem %s14, 16, [#allocation5], [#allocation3]
  %17 = dma.done [#allocation3], 48
  %18 = sfence
  $region1: #{lr_lightgcn_forward.3} parent=0
    #allocation6 [shape = 'u8[65536]{0}', space=vmem, size = 0x10000, scoped, tag = 'input window, operand 2']
    loop: start=0, step=1, limit=4
    $region2: #{lr_lightgcn_forward.3} parent=1 // loop_pre_header
      _
    $region3: #{lr_lightgcn_forward.3} parent=1 // loop_header
      %s20 = sphi 0, %s24
      %p21 = scmp.ge.s32.totalorder %s20, 4
      %s27 = sphi 0, %s39
      %s28 = sphi 0, %s35
      %s29 = sphi 0, %s27
      %s30 = sphi 0, %s28
      %s31 = sphi 0, %s29
      %s32 = sphi 0, %s30
      %s60 = sphi 0, %s62
      %s63 = sphi 0, %s60
      %s64 = sphi 0, %s63
      %s80 = sphi 0, %s64
      %s102 = sphi 0, %s104
      %s105 = sphi 0, %s102
      %s106 = sphi 0, %s105
      %s122 = sphi 0, %s106
      %s128 = sphi 0, %s130
      %s131 = sphi 0, %s128
      %s132 = sphi 0, %s131
      %s148 = sphi 0, %s132
    $region4: #{lr_lightgcn_forward.3} parent=1 // loop_header_branch
      %23 = sbr.rel (%p21) target = $region8
    $region5: #{lr_lightgcn_forward.3} parent=1 // loop_body
      %s25 = ssub.s32 %s20, 1
      %s26 = ssub.s32 %s20, 2
      %s33 = sadd.s32 1, %s28
      %p34 = scmp.ge.s32.totalorder %s33, 1
      %s35 = scalar_select %p34, 0, %s33
      %s36 = sadd.s32 1, %s27
      %s37 = scalar_select %p34, %s36, %s27
      %p38 = scmp.ge.s32.totalorder %s37, 2
      %s39 = scalar_select %p38, 0, %s37
      %s40 = sshra.s32 %s28, 7
      %s41 = sand.u32 %s28, 127
      %s42 = sadd.s32 %s40, %s27
      %s43 = smul.u32 %s42, 128
      %s44 = sshra.s32 %s28, 7
      %s45 = sand.u32 %s28, 127
      %s46 = sadd.s32 %s43, %s45
      %s47 = sld [smem:[#allocation4 + %s46]]
      %s48 = sshra.s32 %s35, 7
      %s49 = sand.u32 %s35, 127
      %s50 = sadd.s32 %s48, %s39
      %s51 = smul.u32 %s50, 128
      %s52 = sshra.s32 %s35, 7
      %s53 = sand.u32 %s35, 127
      %s54 = sadd.s32 %s51, %s53
      %s55 = sld [smem:[#allocation4 + %s54]]
      %s56 = ssub.s32 %s27, %s39
      %s57 = ssub.s32 %s47, %s55
      %s58 = sor.u32 %s56, %s57
      %p59 = scmp.eq.s32.totalorder %s58, 0
      %s61 = sadd.s32 %s60, 1
      %s62 = scalar_select %p59, %s60, %s61
      %p65 = pneg %p59
      %p66 = scmp.eq.s32.totalorder %s20, 1
      %p67 = por %p65, %p66
      %p68 = scmp.ne.s32.totalorder %s60, %s63
      %p69 = scmp.eq.s32.totalorder %s20, 0
      %p70 = por %p68, %p69
      %p71 = scmp.ne.s32.totalorder %s60, %s63
      %p72 = scmp.eq.s32.totalorder %s25, 1
      %p73 = por %p71, %p72
      %p74 = scmp.ne.s32.totalorder %s63, %s64
      %p75 = scmp.eq.s32.totalorder %s25, 0
      %p76 = por %p74, %p75
      %p77 = scmp.ne.s32.totalorder %s63, %s64
      %p78 = scmp.eq.s32.totalorder %s26, 1
      %p79 = por %p77, %p78
      %p81 = scmp.ne.s32.totalorder %s64, %s80
      %p82 = scmp.eq.s32.totalorder %s26, 0
      %p83 = por %p81, %p82
      %s84 = sshra.s32 %s28, 7
      %s85 = sand.u32 %s28, 127
      %s86 = sadd.s32 %s84, %s27
      %s87 = smul.u32 %s86, 128
      %s88 = sshra.s32 %s28, 7
      %s89 = sand.u32 %s28, 127
      %s90 = sadd.s32 %s87, %s89
      %s91 = sld [smem:[#allocation4 + %s90]]
      %s92 = sshra.s32 %s35, 7
      %s93 = sand.u32 %s35, 127
      %s94 = sadd.s32 %s92, %s39
      %s95 = smul.u32 %s94, 128
      %s96 = sshra.s32 %s35, 7
      %s97 = sand.u32 %s35, 127
      %s98 = sadd.s32 %s95, %s97
      %s99 = sld [smem:[#allocation4 + %s98]]
      %s100 = ssub.s32 %s91, %s99
      %p101 = scmp.eq.s32.totalorder %s100, 0
      %s103 = sadd.s32 %s102, 1
      %s104 = scalar_select %p101, %s102, %s103
      %p107 = pneg %p101
      %p108 = scmp.eq.s32.totalorder %s20, 1
      %p109 = por %p107, %p108
      %p110 = scmp.ne.s32.totalorder %s102, %s105
      %p111 = scmp.eq.s32.totalorder %s20, 0
      %p112 = por %p110, %p111
      %p113 = scmp.ne.s32.totalorder %s102, %s105
      %p114 = scmp.eq.s32.totalorder %s25, 1
      %p115 = por %p113, %p114
      %p116 = scmp.ne.s32.totalorder %s105, %s106
      %p117 = scmp.eq.s32.totalorder %s25, 0
      %p118 = por %p116, %p117
      %p119 = scmp.ne.s32.totalorder %s105, %s106
      %p120 = scmp.eq.s32.totalorder %s26, 1
      %p121 = por %p119, %p120
      %p123 = scmp.ne.s32.totalorder %s106, %s122
      %p124 = scmp.eq.s32.totalorder %s26, 0
      %p125 = por %p123, %p124
      %s126 = ssub.s32 %s27, %s39
      %p127 = scmp.eq.s32.totalorder %s126, 0
      %s129 = sadd.s32 %s128, 1
      %s130 = scalar_select %p127, %s128, %s129
      %p133 = pneg %p127
      %p134 = scmp.eq.s32.totalorder %s20, 1
      %p135 = por %p133, %p134
      %p136 = scmp.ne.s32.totalorder %s128, %s131
      %p137 = scmp.eq.s32.totalorder %s20, 0
      %p138 = por %p136, %p137
      %p139 = scmp.ne.s32.totalorder %s128, %s131
      %p140 = scmp.eq.s32.totalorder %s25, 1
      %p141 = por %p139, %p140
      %p142 = scmp.ne.s32.totalorder %s131, %s132
      %p143 = scmp.eq.s32.totalorder %s25, 0
      %p144 = por %p142, %p143
      %p145 = scmp.ne.s32.totalorder %s131, %s132
      %p146 = scmp.eq.s32.totalorder %s26, 1
      %p147 = por %p145, %p146
      %p149 = scmp.ne.s32.totalorder %s132, %s148
      %p150 = scmp.eq.s32.totalorder %s26, 0
      %p151 = por %p149, %p150
      %p152 = scmp.le.s32.totalorder 1, %s20
      %p153 = scmp.lt.s32.totalorder %s20, 3
      %p154 = pnand %p152, %p153
      %p155 = pneg %p154
      // Predicated region
      $region9: #{lr_lightgcn_forward.3} parent=5 // pred_check
        _
      $region10: #{lr_lightgcn_forward.3} parent=5 // pred_check_branch
        %157 = sbr.rel (%p154) target = $region12
      $region11: #{lr_lightgcn_forward.3} parent=5 // pred_region
        %s158 = ssub.s32 %s20, 1
      $region12: #{lr_lightgcn_forward.3} parent=5 // pred_fallthru
        _
      %p159 = scmp.lt.s32.totalorder %s20, 2
      // Predicated region
      $region13: #{lr_lightgcn_forward.3} parent=5 // pred_check
        %p160 = pneg %p159
      $region14: #{lr_lightgcn_forward.3} parent=5 // pred_check_branch
        %162 = sbr.rel (%p160) target = $region16
      $region15: #{lr_lightgcn_forward.3} parent=5 // pred_region
        // Predicated region
        $region17: #{lr_lightgcn_forward.3} parent=15 // pred_check
          %p163 = pneg %p70
        $region18: #{lr_lightgcn_forward.3} parent=15 // pred_check_branch
          %165 = sbr.rel (%p163) target = $region20
        $region19: #{lr_lightgcn_forward.3} parent=15 // pred_region
          %s166 = sand.u32 %s60, 1
          %s167 = sand.u32 %s60, 1
          %s168 = smul.addr %s167, 64
          %s169 = scalar_lea.vmem [#allocation6], %s168
          %s170 = sshra.s32 %s28, 7
          %s171 = sand.u32 %s28, 127
          %s172 = sadd.s32 %s170, %s27
          %s173 = smul.u32 %s172, 128
          %s174 = sshra.s32 %s28, 7
          %s175 = sand.u32 %s28, 127
          %s176 = sadd.s32 %s173, %s175
          %s177 = sld [smem:[#allocation4 + %s176]]
          %s178 = smul.u32 16, %s27
          %s179 = smul.addr %s178, 2
          %s180 = sadd.s32 %s177, %s179
          %s181 = smul.addr %s180, 4
          %s182 = scalar_lea.vmem %s2, %s181
          // Predicated region
          $region21: #{lr_lightgcn_forward.3} parent=19 // pred_check
            _
          $region22: #{lr_lightgcn_forward.3} parent=19 // pred_check_branch
            %184 = sbr.rel (0) target = $region24
          $region23: #{lr_lightgcn_forward.3} parent=19 // pred_region
            // Predicated region
            $region25: #{lr_lightgcn_forward.3} parent=23 // pred_check
              _
            $region26: #{lr_lightgcn_forward.3} parent=23 // pred_check_branch
              %186 = sbr.rel target = $region28
            $region27: #{lr_lightgcn_forward.3} parent=23 // pred_region
              // Predicated region
              $region40: #{lr_lightgcn_forward.3} parent=27 // pred_check
                _
              $region41: #{lr_lightgcn_forward.3} parent=27 // pred_check_branch
                %232 = sbr.rel (0) target = $region43
              $region42: #{lr_lightgcn_forward.3} parent=27 // pred_region
                loop: start=0, step=1, limit=1
                $region44: #{lr_lightgcn_forward.3} parent=42 // loop_pre_header
                  _
                $region45: #{lr_lightgcn_forward.3} parent=42 // loop_header
                  %s234 = sphi 0, %s238
                  %p235 = scmp.ge.s32.totalorder %s234, 1
                  %s239 = sphi %s182, %s182
                  %s240 = sphi %s169, %s169
                $region46: #{lr_lightgcn_forward.3} parent=42 // loop_header_branch
                  %237 = sbr.rel (%p235) target = $region50
                $region47: #{lr_lightgcn_forward.3} parent=42 // loop_body
                  _
                $region48: #{lr_lightgcn_forward.3} parent=42 // loop_footer
                  %s238 = sadd.s32 1, %s234
                $region49: #{lr_lightgcn_forward.3} parent=42 // loop_footer_branch
                  %233 = sbr.rel target = $region45
                $region50: #{lr_lightgcn_forward.3} parent=42 // loop_exit
                  _
                %s242 = ssub.s32 16, 1
                loop: start=0, step=1, limit=1
                $region51: #{lr_lightgcn_forward.3} parent=42 // loop_pre_header
                  _
                $region52: #{lr_lightgcn_forward.3} parent=42 // loop_header
                  %s244 = sphi 0, %s248
                  %p245 = scmp.ge.s32.totalorder %s244, 1
                  %s249 = sphi %s182, %s182
                  %s250 = sphi %s169, %s169
                $region53: #{lr_lightgcn_forward.3} parent=42 // loop_header_branch
                  %247 = sbr.rel (%p245) target = $region57
                $region54: #{lr_lightgcn_forward.3} parent=42 // loop_body
                  %v251 = vld [vmem:[%s249] sm:%s242]
                  %252 = vst [vmem:[%s250] sm:%s242] %v251
                  %v253 = vld [vmem:[%s249 + $0x8] sm:%s242]
                  %254 = vst [vmem:[%s250 + $0x4] sm:%s242] %v253
                  %v255 = vld [vmem:[%s249 + $0x10] sm:%s242]
                  %256 = vst [vmem:[%s250 + $0x8] sm:%s242] %v255
                  %v257 = vld [vmem:[%s249 + $0x18] sm:%s242]
                  %258 = vst [vmem:[%s250 + $0xc] sm:%s242] %v257
                  %v259 = vld [vmem:[%s249 + $0x20] sm:%s242]
                  %260 = vst [vmem:[%s250 + $0x10] sm:%s242] %v259
                  %v261 = vld [vmem:[%s249 + $0x28] sm:%s242]
                  %262 = vst [vmem:[%s250 + $0x14] sm:%s242] %v261
                  %v263 = vld [vmem:[%s249 + $0x30] sm:%s242]
                  %264 = vst [vmem:[%s250 + $0x18] sm:%s242] %v263
                  %v265 = vld [vmem:[%s249 + $0x38] sm:%s242]
                  %266 = vst [vmem:[%s250 + $0x1c] sm:%s242] %v265
                  %v267 = vld [vmem:[%s249 + $0x40] sm:%s242]
                  %268 = vst [vmem:[%s250 + $0x20] sm:%s242] %v267
                  %v269 = vld [vmem:[%s249 + $0x48] sm:%s242]
                  %270 = vst [vmem:[%s250 + $0x24] sm:%s242] %v269
                  %v271 = vld [vmem:[%s249 + $0x50] sm:%s242]
                  %272 = vst [vmem:[%s250 + $0x28] sm:%s242] %v271
                  %v273 = vld [vmem:[%s249 + $0x58] sm:%s242]
                  %274 = vst [vmem:[%s250 + $0x2c] sm:%s242] %v273
                  %v275 = vld [vmem:[%s249 + $0x60] sm:%s242]
                  %276 = vst [vmem:[%s250 + $0x30] sm:%s242] %v275
                  %v277 = vld [vmem:[%s249 + $0x68] sm:%s242]
                  %278 = vst [vmem:[%s250 + $0x34] sm:%s242] %v277
                  %v279 = vld [vmem:[%s249 + $0x70] sm:%s242]
                  %280 = vst [vmem:[%s250 + $0x38] sm:%s242] %v279
                  %v281 = vld [vmem:[%s249 + $0x78] sm:%s242]
                  %282 = vst [vmem:[%s250 + $0x3c] sm:%s242] %v281
                $region55: #{lr_lightgcn_forward.3} parent=42 // loop_footer
                  %s248 = sadd.s32 1, %s244
                $region56: #{lr_lightgcn_forward.3} parent=42 // loop_footer_branch
                  %243 = sbr.rel target = $region52
                $region57: #{lr_lightgcn_forward.3} parent=42 // loop_exit
                  _
              $region43: #{lr_lightgcn_forward.3} parent=27 // pred_fallthru
                _
            $region28: #{lr_lightgcn_forward.3} parent=23 // pred_fallthru
              _
            // Predicated region
            $region29: #{lr_lightgcn_forward.3} parent=23 // pred_check
              _
            $region30: #{lr_lightgcn_forward.3} parent=23 // pred_check_branch
              %188 = sbr.rel (0) target = $region32
            $region31: #{lr_lightgcn_forward.3} parent=23 // pred_region
              %s190 = ssub.s32 16, 1
              loop: start=0, step=1, limit=1
              $region33: #{lr_lightgcn_forward.3} parent=31 // loop_pre_header
                _
              $region34: #{lr_lightgcn_forward.3} parent=31 // loop_header
                %s192 = sphi 0, %s196
                %p193 = scmp.ge.s32.totalorder %s192, 1
                %s197 = sphi %s182, %s182
                %s198 = sphi %s169, %s169
              $region35: #{lr_lightgcn_forward.3} parent=31 // loop_header_branch
                %195 = sbr.rel (%p193) target = $region39
              $region36: #{lr_lightgcn_forward.3} parent=31 // loop_body
                %v199 = vld [vmem:[%s197] sm:%s190]
                %200 = vst [vmem:[%s198] sm:%s190] %v199
                %v201 = vld [vmem:[%s197 + $0x8] sm:%s190]
                %202 = vst [vmem:[%s198 + $0x4] sm:%s190] %v201
                %v203 = vld [vmem:[%s197 + $0x10] sm:%s190]
                %204 = vst [vmem:[%s198 + $0x8] sm:%s190] %v203
                %v205 = vld [vmem:[%s197 + $0x18] sm:%s190]
                %206 = vst [vmem:[%s198 + $0xc] sm:%s190] %v205
                %v207 = vld [vmem:[%s197 + $0x20] sm:%s190]
                %208 = vst [vmem:[%s198 + $0x10] sm:%s190] %v207
                %v209 = vld [vmem:[%s197 + $0x28] sm:%s190]
                %210 = vst [vmem:[%s198 + $0x14] sm:%s190] %v209
                %v211 = vld [vmem:[%s197 + $0x30] sm:%s190]
                %212 = vst [vmem:[%s198 + $0x18] sm:%s190] %v211
                %v213 = vld [vmem:[%s197 + $0x38] sm:%s190]
                %214 = vst [vmem:[%s198 + $0x1c] sm:%s190] %v213
                %v215 = vld [vmem:[%s197 + $0x40] sm:%s190]
                %216 = vst [vmem:[%s198 + $0x20] sm:%s190] %v215
                %v217 = vld [vmem:[%s197 + $0x48] sm:%s190]
                %218 = vst [vmem:[%s198 + $0x24] sm:%s190] %v217
                %v219 = vld [vmem:[%s197 + $0x50] sm:%s190]
                %220 = vst [vmem:[%s198 + $0x28] sm:%s190] %v219
                %v221 = vld [vmem:[%s197 + $0x58] sm:%s190]
                %222 = vst [vmem:[%s198 + $0x2c] sm:%s190] %v221
                %v223 = vld [vmem:[%s197 + $0x60] sm:%s190]
                %224 = vst [vmem:[%s198 + $0x30] sm:%s190] %v223
                %v225 = vld [vmem:[%s197 + $0x68] sm:%s190]
                %226 = vst [vmem:[%s198 + $0x34] sm:%s190] %v225
                %v227 = vld [vmem:[%s197 + $0x70] sm:%s190]
                %228 = vst [vmem:[%s198 + $0x38] sm:%s190] %v227
                %v229 = vld [vmem:[%s197 + $0x78] sm:%s190]
                %230 = vst [vmem:[%s198 + $0x3c] sm:%s190] %v229
              $region37: #{lr_lightgcn_forward.3} parent=31 // loop_footer
                %s196 = sadd.s32 1, %s192
              $region38: #{lr_lightgcn_forward.3} parent=31 // loop_footer_branch
                %191 = sbr.rel target = $region34
              $region39: #{lr_lightgcn_forward.3} parent=31 // loop_exit
                _
            $region32: #{lr_lightgcn_forward.3} parent=23 // pred_fallthru
              _
          $region24: #{lr_lightgcn_forward.3} parent=19 // pred_fallthru
            _
          %283 = vnop
        $region20: #{lr_lightgcn_forward.3} parent=15 // pred_fallthru
          _
        // Predicated region
        $region58: #{lr_lightgcn_forward.3} parent=15 // pred_check
          %p284 = pneg %p112
        $region59: #{lr_lightgcn_forward.3} parent=15 // pred_check_branch
          %286 = sbr.rel (%p284) target = $region61
        $region60: #{lr_lightgcn_forward.3} parent=15 // pred_region
          %s287 = sshra.s32 %s28, 7
          %s288 = sand.u32 %s28, 127
          %s289 = sadd.s32 %s287, %s27
          %s290 = smul.u32 %s289, 128
          %s291 = sshra.s32 %s28, 7
          %s292 = sand.u32 %s28, 127
          %s293 = sadd.s32 %s290, %s292
          %s294 = sld [smem:[#allocation4 + %s293]]
          %s295 = smul.u32 16, %s294
          %p296 = scmp.lt.s32.totalorder %s295, 31
          %s297 = scalar_select %p296, %s295, 31
          %s298 = smul.addr %s297, 4
          %s299 = scalar_lea.vmem %s3, %s298
          %s300 = sshra.s32 %s28, 7
          %s301 = sand.u32 %s28, 127
          %s302 = sadd.s32 %s300, %s27
          %s303 = smul.u32 %s302, 128
          %s304 = sshra.s32 %s28, 7
          %s305 = sand.u32 %s28, 127
          %s306 = sadd.s32 %s303, %s305
          %s307 = sld [smem:[#allocation4 + %s306]]
          %s308 = smul.u32 16, %s307
        $region61: #{lr_lightgcn_forward.3} parent=15 // pred_fallthru
          _
      $region16: #{lr_lightgcn_forward.3} parent=5 // pred_fallthru
        _
      %p309 = scmp.le.s32.totalorder 1, %s20
      %p310 = scmp.lt.s32.totalorder %s20, 3
      %p311 = pnand %p309, %p310
      %p312 = pneg %p311
      // Predicated region
      $region62: #{lr_lightgcn_forward.3} parent=5 // pred_check
        _
      $region63: #{lr_lightgcn_forward.3} parent=5 // pred_check_branch
        %314 = sbr.rel (%p311) target = $region65
      $region64: #{lr_lightgcn_forward.3} parent=5 // pred_region
        %s315 = ssub.s32 %s20, 1
        %s316 = sand.u32 %s63, 1
        %s317 = sand.u32 %s63, 1
        %s318 = smul.addr %s317, 64
        %s319 = scalar_lea.vmem [#allocation6], %s318
        // Predicated region
        $region66: #{lr_lightgcn_forward.3} parent=64 // pred_check
          %p320 = pneg %p76
        $region67: #{lr_lightgcn_forward.3} parent=64 // pred_check_branch
          %322 = sbr.rel (%p320) target = $region69
        $region68: #{lr_lightgcn_forward.3} parent=64 // pred_region
          _
        $region69: #{lr_lightgcn_forward.3} parent=64 // pred_fallthru
          _
        %s323 = sand.u32 %s63, 1
        %s324 = sand.u32 %s63, 1
        %s325 = smul.addr %s324, 64
        %s326 = scalar_lea.vmem [#allocation6], %s325
        %p327 = pneg %p76
        %p328 = pneg %p73
        %s329 = sshra.s32 %s30, 7
        %s330 = sand.u32 %s30, 127
        %s331 = sadd.s32 %s329, %s29
        %s332 = smul.u32 %s331, 128
        %s333 = sshra.s32 %s30, 7
        %s334 = sand.u32 %s30, 127
        %s335 = sadd.s32 %s332, %s334
        %s336 = sld [smem:[#allocation4 + %s335]]
        %s337 = smul.u32 16, %s336
        %p338 = scmp.lt.s32.totalorder %s337, 31
        %s339 = scalar_select %p338, %s337, 31
        %s340 = smul.addr %s339, 4
        %s341 = scalar_lea.vmem %s3, %s340
        %p342 = pneg %p118
        %p343 = pneg %p115
        %p344 = pneg %p144
        %p345 = pneg %p141
        %s346 = smul.u32 16, %s29
        %p347 = scmp.lt.s32.totalorder %s346, 31
        %s348 = scalar_select %p347, %s346, 31
        %s349 = smul.addr %s348, 8
        %s350 = scalar_lea.vmem %s4, %s349
        %s351 = sshra.s32 %s30, 7
        %s352 = sand.u32 %s30, 127
        %s353 = sadd.s32 %s351, %s29
        %s354 = smul.u32 %s353, 128
        %s355 = sshra.s32 %s30, 7
        %s356 = sand.u32 %s30, 127
        %s357 = sadd.s32 %s354, %s356
        %s358 = sld [smem:[#allocation4 + %s357]]
        %s359 = smul.u32 16, %s29
        %s360 = sshra.s32 %s30, 7
        %s361 = sand.u32 %s30, 127
        %s362 = sadd.s32 %s360, %s29
        %s363 = smul.u32 %s362, 128
        %s364 = sshra.s32 %s30, 7
        %s365 = sand.u32 %s30, 127
        %s366 = sadd.s32 %s363, %s365
        %s367 = sld [smem:[#allocation4 + %s366]]
        %s368 = smul.u32 16, %s367
        %p369 = scmp.lt.s32.totalorder %s368, 31
        %s370 = scalar_select %p369, %s368, 31
        %s371 = smul.addr %s370, 4
        %s372 = scalar_lea.vmem %s3, %s371
        %s373 = sshra.s32 %s30, 7
        %s374 = sand.u32 %s30, 127
        %s375 = sadd.s32 %s373, %s29
        %s376 = smul.u32 %s375, 128
        %s377 = sshra.s32 %s30, 7
        %s378 = sand.u32 %s30, 127
        %s379 = sadd.s32 %s376, %s378
        %s380 = sld [smem:[#allocation4 + %s379]]
        %s381 = smul.u32 16, %s380
        %s382 = smul.u32 16, %s29
        %p383 = scmp.lt.s32.totalorder %s382, 31
        %s384 = scalar_select %p383, %s382, 31
        %s385 = smul.addr %s384, 8
        %s386 = scalar_lea.vmem %s4, %s385
        %s387 = smul.u32 16, %s29
        %p389 = scmp.eq.s32.totalorder %s30, 0
        // Predicated region
        $region70: #{lr_lightgcn_forward.3} parent=64 // pred_check
          %p390 = pneg %p389
        $region71: #{lr_lightgcn_forward.3} parent=64 // pred_check_branch
          %392 = sbr.rel (%p390) target = $region73
        $region72: #{lr_lightgcn_forward.3} parent=64 // pred_region
          %393 = vst [vmem:[#allocation2] sm:$0xff] 0.0
          %394 = vst [vmem:[#allocation2 + $0x8] sm:$0xff] 0.0
          %395 = vst [vmem:[#allocation2 + $0x10] sm:$0xff] 0.0
          %396 = vst [vmem:[#allocation2 + $0x18] sm:$0xff] 0.0
          %397 = vst [vmem:[#allocation2 + $0x20] sm:$0xff] 0.0
          %398 = vst [vmem:[#allocation2 + $0x28] sm:$0xff] 0.0
          %399 = vst [vmem:[#allocation2 + $0x30] sm:$0xff] 0.0
          %400 = vst [vmem:[#allocation2 + $0x38] sm:$0xff] 0.0
          %401 = vst [vmem:[#allocation2 + $0x40] sm:$0xff] 0.0
          %402 = vst [vmem:[#allocation2 + $0x48] sm:$0xff] 0.0
          %403 = vst [vmem:[#allocation2 + $0x50] sm:$0xff] 0.0
          %404 = vst [vmem:[#allocation2 + $0x58] sm:$0xff] 0.0
          %405 = vst [vmem:[#allocation2 + $0x60] sm:$0xff] 0.0
          %406 = vst [vmem:[#allocation2 + $0x68] sm:$0xff] 0.0
          %407 = vst [vmem:[#allocation2 + $0x70] sm:$0xff] 0.0
          %408 = vst [vmem:[#allocation2 + $0x78] sm:$0xff] 0.0
        $region73: #{lr_lightgcn_forward.3} parent=64 // pred_fallthru
          _
        %s409 = sld [smem:[#allocation5 + %s29]]
        %p410 = scmp.lt.s32.totalorder %s30, %s409
        // Predicated region
        $region74: #{lr_lightgcn_forward.3} parent=64 // pred_check
          %p411 = pneg %p410
        $region75: #{lr_lightgcn_forward.3} parent=64 // pred_check_branch
          %413 = sbr.rel (%p411) target = $region77
        $region76: #{lr_lightgcn_forward.3} parent=64 // pred_region
          %v414 = vld [vmem:[#allocation2] sm:$0xff]
          %v415 = vld [vmem:[#allocation2 + $0x8] sm:$0xff]
          %v416 = vld [vmem:[#allocation2 + $0x10] sm:$0xff]
          %v417 = vld [vmem:[#allocation2 + $0x18] sm:$0xff]
          %v418 = vld [vmem:[#allocation2 + $0x20] sm:$0xff]
          %v419 = vld [vmem:[#allocation2 + $0x28] sm:$0xff]
          %v420 = vld [vmem:[#allocation2 + $0x30] sm:$0xff]
          %v421 = vld [vmem:[#allocation2 + $0x38] sm:$0xff]
          %v422 = vld [vmem:[#allocation2 + $0x40] sm:$0xff]
          %v423 = vld [vmem:[#allocation2 + $0x48] sm:$0xff]
          %v424 = vld [vmem:[#allocation2 + $0x50] sm:$0xff]
          %v425 = vld [vmem:[#allocation2 + $0x58] sm:$0xff]
          %v426 = vld [vmem:[#allocation2 + $0x60] sm:$0xff]
          %v427 = vld [vmem:[#allocation2 + $0x68] sm:$0xff]
          %v428 = vld [vmem:[#allocation2 + $0x70] sm:$0xff]
          %v429 = vld [vmem:[#allocation2 + $0x78] sm:$0xff]
          %v430 = vld [vmem:[%s319] sm:$0xf]
          %v431 = vld [vmem:[%s319 + $0x4] sm:$0xf]
          %v432 = vld [vmem:[%s319 + $0x8] sm:$0xf]
          %v433 = vld [vmem:[%s319 + $0xc] sm:$0xf]
          %v434 = vld [vmem:[%s319 + $0x10] sm:$0xf]
          %v435 = vld [vmem:[%s319 + $0x14] sm:$0xf]
          %v436 = vld [vmem:[%s319 + $0x18] sm:$0xf]
          %v437 = vld [vmem:[%s319 + $0x1c] sm:$0xf]
          %v438 = vld [vmem:[%s319 + $0x20] sm:$0xf]
          %v439 = vld [vmem:[%s319 + $0x24] sm:$0xf]
          %v440 = vld [vmem:[%s319 + $0x28] sm:$0xf]
          %v441 = vld [vmem:[%s319 + $0x2c] sm:$0xf]
          %v442 = vld [vmem:[%s319 + $0x30] sm:$0xf]
          %v443 = vld [vmem:[%s319 + $0x34] sm:$0xf]
          %v444 = vld [vmem:[%s319 + $0x38] sm:$0xf]
          %v445 = vld [vmem:[%s319 + $0x3c] sm:$0xf]
          %v446 = vld [vmem:[%s372] sm:$0xf]
          %v447 = vld [vmem:[%s372 + $0x4] sm:$0xf]
          %v448 = vld [vmem:[%s372 + $0x8] sm:$0xf]
          %v449 = vld [vmem:[%s372 + $0xc] sm:$0xf]
          %v450 = vld [vmem:[%s372 + $0x10] sm:$0xf]
          %v451 = vld [vmem:[%s372 + $0x14] sm:$0xf]
          %v452 = vld [vmem:[%s372 + $0x18] sm:$0xf]
          %v453 = vld [vmem:[%s372 + $0x1c] sm:$0xf]
          %v454 = vld [vmem:[%s372 + $0x20] sm:$0xf]
          %v455 = vld [vmem:[%s372 + $0x24] sm:$0xf]
          %v456 = vld [vmem:[%s372 + $0x28] sm:$0xf]
          %v457 = vld [vmem:[%s372 + $0x2c] sm:$0xf]
          %v458 = vld [vmem:[%s372 + $0x30] sm:$0xf]
          %v459 = vld [vmem:[%s372 + $0x34] sm:$0xf]
          %v460 = vld [vmem:[%s372 + $0x38] sm:$0xf]
          %v461 = vld [vmem:[%s372 + $0x3c] sm:$0xf]
          %v478 = vunpack.c.l.b16 %v430
          %v479 = vunpack.c.l.b16 %v431
          %v480 = vunpack.c.l.b16 %v432
          %v481 = vunpack.c.l.b16 %v433
          %v482 = vunpack.c.l.b16 %v434
          %v483 = vunpack.c.l.b16 %v435
          %v484 = vunpack.c.l.b16 %v436
          %v485 = vunpack.c.l.b16 %v437
          %v486 = vunpack.c.l.b16 %v438
          %v487 = vunpack.c.l.b16 %v439
          %v488 = vunpack.c.l.b16 %v440
          %v489 = vunpack.c.l.b16 %v441
          %v490 = vunpack.c.l.b16 %v442
          %v491 = vunpack.c.l.b16 %v443
          %v492 = vunpack.c.l.b16 %v444
          %v493 = vunpack.c.l.b16 %v445
          %v494 = vpack.c.b16 %v479, %v478
          %v495 = vpack.c.b16 %v481, %v480
          %v496 = vpack.c.b16 %v483, %v482
          %v497 = vpack.c.b16 %v485, %v484
          %v498 = vpack.c.b16 %v487, %v486
          %v499 = vpack.c.b16 %v489, %v488
          %v500 = vpack.c.b16 %v491, %v490
          %v501 = vpack.c.b16 %v493, %v492
          %v526 = vunpack.c.l.b16 %v446
          %v527 = vunpack.c.l.b16 %v447
          %v528 = vunpack.c.l.b16 %v448
          %v529 = vunpack.c.l.b16 %v449
          %v530 = vunpack.c.l.b16 %v450
          %v531 = vunpack.c.l.b16 %v451
          %v532 = vunpack.c.l.b16 %v452
          %v533 = vunpack.c.l.b16 %v453
          %v534 = vunpack.c.l.b16 %v454
          %v535 = vunpack.c.l.b16 %v455
          %v536 = vunpack.c.l.b16 %v456
          %v537 = vunpack.c.l.b16 %v457
          %v538 = vunpack.c.l.b16 %v458
          %v539 = vunpack.c.l.b16 %v459
          %v540 = vunpack.c.l.b16 %v460
          %v541 = vunpack.c.l.b16 %v461
          %v542 = vpack.c.b16 %v527, %v526
          %v543 = vpack.c.b16 %v529, %v528
          %v544 = vpack.c.b16 %v531, %v530
          %v545 = vpack.c.b16 %v533, %v532
          %v546 = vpack.c.b16 %v535, %v534
          %v547 = vpack.c.b16 %v537, %v536
          %v548 = vpack.c.b16 %v539, %v538
          %v549 = vpack.c.b16 %v541, %v540
          %558 = vmatprep.subr.bf16.mxu0 0
          %559 = vmatpush1.bf16.msra.mxu0 %v549
          %560 = vmatprep.subr.bf16.mxu0 0
          %561 = vmatpush1.bf16.msra.mxu0 %v548
          %562 = vmatprep.subr.bf16.mxu0 0
          %563 = vmatpush1.bf16.msra.mxu0 %v547
          %564 = vmatprep.subr.bf16.mxu0 0
          %565 = vmatpush1.bf16.msra.mxu0 %v546
          %566 = vmatprep.subr.bf16.mxu0 0
          %567 = vmatpush1.bf16.msra.mxu0 %v545
          %568 = vmatprep.subr.bf16.mxu0 0
          %569 = vmatpush1.bf16.msra.mxu0 %v544
          %570 = vmatprep.subr.bf16.mxu0 0
          %571 = vmatpush1.bf16.msra.mxu0 %v543
          %572 = vmatprep.subr.bf16.mxu0 0
          %573 = vmatpush1.bf16.msra.mxu0 %v542
          %574 = vmatprep.subr.bf16.mxu0 0
          %575 = vmatpush2.bf16.msra.mxu0 0
          %576 = vmatprep.subr.bf16.mxu0 0
          %577 = vmatpush2.bf16.msra.mxu0 0
          %578 = vmatprep.subr.bf16.mxu0 0
          %579 = vmatpush2.bf16.msra.mxu0 0
          %580 = vmatprep.subr.bf16.mxu0 0
          %581 = vmatpush2.bf16.msra.mxu0 0
          %582 = vmatprep.subr.bf16.mxu0 0
          %583 = vmatpush2.bf16.msra.mxu0 0
          %584 = vmatprep.subr.bf16.mxu0 0
          %585 = vmatpush2.bf16.msra.mxu0 0
          %586 = vmatprep.subr.bf16.mxu0 0
          %587 = vmatpush2.bf16.msra.mxu0 0
          %588 = vmatprep.subr.bf16.mxu0 0
          %589 = vmatpush2.bf16.msra.mxu0 0
          %590 = vmatprep.mubr.bf16.mxu0 0
          %591 = vmatmul.mubr.bf16.gmra.mxu0 %v494
          %v592 = vpop.f32.mrf.mxu0
          %v593 = vadd.f32 0.0, %v592
          %v594 = vpop.f32.mrf.mxu0
          %v595 = vpop.f32.mrf.mxu0
          %v596 = vadd.f32 0.0, %v595
          %v597 = vpop.f32.mrf.mxu0
          %598 = vmatprep.mubr.bf16.mxu0 0
          %599 = vmatmul.mubr.bf16.gmra.mxu0 %v495
          %v600 = vpop.f32.mrf.mxu0
          %v601 = vadd.f32 0.0, %v600
          %v602 = vpop.f32.mrf.mxu0
          %v603 = vpop.f32.mrf.mxu0
          %v604 = vadd.f32 0.0, %v603
          %v605 = vpop.f32.mrf.mxu0
          %606 = vmatprep.mubr.bf16.mxu0 0
          %607 = vmatmul.mubr.bf16.gmra.mxu0 %v496
          %v608 = vpop.f32.mrf.mxu0
          %v609 = vadd.f32 0.0, %v608
          %v610 = vpop.f32.mrf.mxu0
          %v611 = vpop.f32.mrf.mxu0
          %v612 = vadd.f32 0.0, %v611
          %v613 = vpop.f32.mrf.mxu0
          %614 = vmatprep.mubr.bf16.mxu0 0
          %615 = vmatmul.mubr.bf16.gmra.mxu0 %v497
          %v616 = vpop.f32.mrf.mxu0
          %v617 = vadd.f32 0.0, %v616
          %v618 = vpop.f32.mrf.mxu0
          %v619 = vpop.f32.mrf.mxu0
          %v620 = vadd.f32 0.0, %v619
          %v621 = vpop.f32.mrf.mxu0
          %622 = vmatprep.mubr.bf16.mxu0 0
          %623 = vmatmul.mubr.bf16.gmra.mxu0 %v498
          %v624 = vpop.f32.mrf.mxu0
          %v625 = vadd.f32 0.0, %v624
          %v626 = vpop.f32.mrf.mxu0
          %v627 = vpop.f32.mrf.mxu0
          %v628 = vadd.f32 0.0, %v627
          %v629 = vpop.f32.mrf.mxu0
          %630 = vmatprep.mubr.bf16.mxu0 0
          %631 = vmatmul.mubr.bf16.gmra.mxu0 %v499
          %v632 = vpop.f32.mrf.mxu0
          %v633 = vadd.f32 0.0, %v632
          %v634 = vpop.f32.mrf.mxu0
          %v635 = vpop.f32.mrf.mxu0
          %v636 = vadd.f32 0.0, %v635
          %v637 = vpop.f32.mrf.mxu0
          %638 = vmatprep.mubr.bf16.mxu0 0
          %639 = vmatmul.mubr.bf16.gmra.mxu0 %v500
          %v640 = vpop.f32.mrf.mxu0
          %v641 = vadd.f32 0.0, %v640
          %v642 = vpop.f32.mrf.mxu0
          %v643 = vpop.f32.mrf.mxu0
          %v644 = vadd.f32 0.0, %v643
          %v645 = vpop.f32.mrf.mxu0
          %646 = vmatprep.mubr.bf16.mxu0 0
          %647 = vmatmul.mubr.bf16.gmra.mxu0 %v501
          %v648 = vpop.f32.mrf.mxu0
          %v649 = vadd.f32 0.0, %v648
          %v650 = vpop.f32.mrf.mxu0
          %v651 = vpop.f32.mrf.mxu0
          %v652 = vadd.f32 0.0, %v651
          %v653 = vpop.f32.mrf.mxu0
          %654 = vdwg.mxu0
          %v655 = vadd.f32 %v414, %v593
          %v656 = vadd.f32 %v415, %v596
          %v657 = vadd.f32 %v416, %v601
          %v658 = vadd.f32 %v417, %v604
          %v659 = vadd.f32 %v418, %v609
          %v660 = vadd.f32 %v419, %v612
          %v661 = vadd.f32 %v420, %v617
          %v662 = vadd.f32 %v421, %v620
          %v663 = vadd.f32 %v422, %v625
          %v664 = vadd.f32 %v423, %v628
          %v665 = vadd.f32 %v424, %v633
          %v666 = vadd.f32 %v425, %v636
          %v667 = vadd.f32 %v426, %v641
          %v668 = vadd.f32 %v427, %v644
          %v669 = vadd.f32 %v428, %v649
          %v670 = vadd.f32 %v429, %v652
          %671 = vst [vmem:[#allocation2] sm:$0xff] %v655
          %672 = vst [vmem:[#allocation2 + $0x8] sm:$0xff] %v656
          %673 = vst [vmem:[#allocation2 + $0x10] sm:$0xff] %v657
          %674 = vst [vmem:[#allocation2 + $0x18] sm:$0xff] %v658
          %675 = vst [vmem:[#allocation2 + $0x20] sm:$0xff] %v659
          %676 = vst [vmem:[#allocation2 + $0x28] sm:$0xff] %v660
          %677 = vst [vmem:[#allocation2 + $0x30] sm:$0xff] %v661
          %678 = vst [vmem:[#allocation2 + $0x38] sm:$0xff] %v662
          %679 = vst [vmem:[#allocation2 + $0x40] sm:$0xff] %v663
          %680 = vst [vmem:[#allocation2 + $0x48] sm:$0xff] %v664
          %681 = vst [vmem:[#allocation2 + $0x50] sm:$0xff] %v665
          %682 = vst [vmem:[#allocation2 + $0x58] sm:$0xff] %v666
          %683 = vst [vmem:[#allocation2 + $0x60] sm:$0xff] %v667
          %684 = vst [vmem:[#allocation2 + $0x68] sm:$0xff] %v668
          %685 = vst [vmem:[#allocation2 + $0x70] sm:$0xff] %v669
          %686 = vst [vmem:[#allocation2 + $0x78] sm:$0xff] %v670
        $region77: #{lr_lightgcn_forward.3} parent=64 // pred_fallthru
          _
        // Predicated region
        $region78: #{lr_lightgcn_forward.3} parent=64 // pred_check
          %p687 = pneg %p389
        $region79: #{lr_lightgcn_forward.3} parent=64 // pred_check_branch
          %689 = sbr.rel (%p687) target = $region81
        $region80: #{lr_lightgcn_forward.3} parent=64 // pred_region
          %v690 = vld [vmem:[#allocation2] sm:$0xff]
          %v691 = vld [vmem:[#allocation2 + $0x8] sm:$0xff]
          %v692 = vld [vmem:[#allocation2 + $0x10] sm:$0xff]
          %v693 = vld [vmem:[#allocation2 + $0x18] sm:$0xff]
          %v694 = vld [vmem:[#allocation2 + $0x20] sm:$0xff]
          %v695 = vld [vmem:[#allocation2 + $0x28] sm:$0xff]
          %v696 = vld [vmem:[#allocation2 + $0x30] sm:$0xff]
          %v697 = vld [vmem:[#allocation2 + $0x38] sm:$0xff]
          %v698 = vld [vmem:[#allocation2 + $0x40] sm:$0xff]
          %v699 = vld [vmem:[#allocation2 + $0x48] sm:$0xff]
          %v700 = vld [vmem:[#allocation2 + $0x50] sm:$0xff]
          %v701 = vld [vmem:[#allocation2 + $0x58] sm:$0xff]
          %v702 = vld [vmem:[#allocation2 + $0x60] sm:$0xff]
          %v703 = vld [vmem:[#allocation2 + $0x68] sm:$0xff]
          %v704 = vld [vmem:[#allocation2 + $0x70] sm:$0xff]
          %v705 = vld [vmem:[#allocation2 + $0x78] sm:$0xff]
          %706 = vst [vmem:[%s386] sm:$0xff] %v690
          %707 = vst [vmem:[%s386 + $0x8] sm:$0xff] %v691
          %708 = vst [vmem:[%s386 + $0x10] sm:$0xff] %v692
          %709 = vst [vmem:[%s386 + $0x18] sm:$0xff] %v693
          %710 = vst [vmem:[%s386 + $0x20] sm:$0xff] %v694
          %711 = vst [vmem:[%s386 + $0x28] sm:$0xff] %v695
          %712 = vst [vmem:[%s386 + $0x30] sm:$0xff] %v696
          %713 = vst [vmem:[%s386 + $0x38] sm:$0xff] %v697
          %714 = vst [vmem:[%s386 + $0x40] sm:$0xff] %v698
          %715 = vst [vmem:[%s386 + $0x48] sm:$0xff] %v699
          %716 = vst [vmem:[%s386 + $0x50] sm:$0xff] %v700
          %717 = vst [vmem:[%s386 + $0x58] sm:$0xff] %v701
          %718 = vst [vmem:[%s386 + $0x60] sm:$0xff] %v702
          %719 = vst [vmem:[%s386 + $0x68] sm:$0xff] %v703
          %720 = vst [vmem:[%s386 + $0x70] sm:$0xff] %v704
          %721 = vst [vmem:[%s386 + $0x78] sm:$0xff] %v705
        $region81: #{lr_lightgcn_forward.3} parent=64 // pred_fallthru
          _
        %s722 = smul.u32 16, %s29
        %p723 = scmp.lt.s32.totalorder %s722, 31
        %s724 = scalar_select %p723, %s722, 31
        %s725 = smul.addr %s724, 8
        %s726 = scalar_lea.vmem %s4, %s725
        // Predicated region
        $region82: #{lr_lightgcn_forward.3} parent=64 // pred_check
          %p727 = pneg %p141
        $region83: #{lr_lightgcn_forward.3} parent=64 // pred_check_branch
          %729 = sbr.rel (%p727) target = $region85
        $region84: #{lr_lightgcn_forward.3} parent=64 // pred_region
          %s730 = smul.u32 16, %s29
        $region85: #{lr_lightgcn_forward.3} parent=64 // pred_fallthru
          _
      $region65: #{lr_lightgcn_forward.3} parent=5 // pred_fallthru
        _
      %p731 = scmp.le.s32.totalorder 2, %s20
      // Predicated region
      $region86: #{lr_lightgcn_forward.3} parent=5 // pred_check
        %p732 = pneg %p731
      $region87: #{lr_lightgcn_forward.3} parent=5 // pred_check_branch
        %734 = sbr.rel (%p732) target = $region89
      $region88: #{lr_lightgcn_forward.3} parent=5 // pred_region
        %s735 = ssub.s32 %s20, 2
        // Predicated region
        $region90: #{lr_lightgcn_forward.3} parent=88 // pred_check
          %p736 = pneg %p147
        $region91: #{lr_lightgcn_forward.3} parent=88 // pred_check_branch
          %738 = sbr.rel (%p736) target = $region93
        $region92: #{lr_lightgcn_forward.3} parent=88 // pred_region
          %s739 = smul.u32 16, %s31
          %p740 = scmp.lt.s32.totalorder %s739, 31
          %s741 = scalar_select %p740, %s739, 31
          %s742 = smul.addr %s741, 8
          %s743 = scalar_lea.vmem %s4, %s742
        $region93: #{lr_lightgcn_forward.3} parent=88 // pred_fallthru
          _
      $region89: #{lr_lightgcn_forward.3} parent=5 // pred_fallthru
        _
    $region6: #{lr_lightgcn_forward.3} parent=1 // loop_footer
      %s24 = sadd.s32 1, %s20
    $region7: #{lr_lightgcn_forward.3} parent=1 // loop_footer_branch
      %19 = sbr.rel target = $region3
    $region8: #{lr_lightgcn_forward.3} parent=1 // loop_exit
      _

// kernel: lr_lightgcn_forward.5
$region0: #{lr_lightgcn_forward.5}
  #allocation0 [shape = 'u32[]', space=smem, size = 0x4, offset = 0x4, fixed_abs, tag = 'smem constant byte address 0x4 - core index']
  #allocation1 [shape = 'u32[144,128]{1,0:T(1,128)}', space=vmem, size = 0x12000, scoped, tag = 'internal scratch']
  %s0 = inlined_call_operand.vmem [shape: f32[3], index: 0, kind: input, shape index: {}]
  %s1 = inlined_call_operand.vmem [shape: f32[3,128,128], index: 1, kind: input, shape index: {}]
  %s2 = inlined_call_operand.vmem [shape: f32[3,128,128], index: 2, kind: input, shape index: {}]
  %s3 = inlined_call_operand.hbm [shape: f32[1,128], index: 3, kind: output, shape index: {}]
  %s4 = sld [smem:[#allocation0]]
  $region26: #{lr_lightgcn_forward.5} parent=0
    _
  %s6 = ssub.s32 1, %s4
  %s7 = scalar_select 0, %s6, %s4
  $region1: #{lr_lightgcn_forward.5} parent=0
    #allocation2 [shape = 'u8[512]{0}', space=smem, size = 0x200, scoped, tag = 'input window, operand 0, single buffered']
    #allocation3 [shape = 's32[1]{0}', space=sflag, size = 0x4, scoped, tag = 'scoped memory for lr_lightgcn_forward.5']
    #allocation4 [shape = 's32[1]{0}', space=sflag, size = 0x4, scoped, tag = 'scoped memory for lr_lightgcn_forward.5']
    #allocation5 [shape = 'u8[512]{0}', space=vmem, size = 0x400, scoped, tag = 'output window, operand 0, single buffered']
    %8 = vsyncpa [#allocation4], 0
    %9 = vsyncpa [#allocation3], 0
    // Predicated region
    $region2: #{lr_lightgcn_forward.5} parent=1 // pred_check
      _
    $region3: #{lr_lightgcn_forward.5} parent=1 // pred_check_branch
      %11 = sbr.rel (0) target = $region5
    $region4: #{lr_lightgcn_forward.5} parent=1 // pred_region
      %s13 = ssub.s32 16, 16
      %14 = vsyncadd [#allocation4], %s13
      %s16 = sshll.u32 %s0, 4
      %s17 = int_to_ptr.vmem [resolvable:$true] %s16
      %19 = dma.vmem_to_smem %s17, 16, [#allocation2], [#allocation4]
    $region5: #{lr_lightgcn_forward.5} parent=1 // pred_fallthru
      _
    // Predicated region
    $region6: #{lr_lightgcn_forward.5} parent=1 // pred_check
      _
    $region7: #{lr_lightgcn_forward.5} parent=1 // pred_check_branch
      %21 = sbr.rel (0) target = $region9
    $region8: #{lr_lightgcn_forward.5} parent=1 // pred_region
      _
    $region9: #{lr_lightgcn_forward.5} parent=1 // pred_fallthru
      _
    // Predicated region
    $region10: #{lr_lightgcn_forward.5} parent=1 // pred_check
      _
    $region11: #{lr_lightgcn_forward.5} parent=1 // pred_check_branch
      %23 = sbr.rel (0) target = $region13
    $region12: #{lr_lightgcn_forward.5} parent=1 // pred_region
      _
    $region13: #{lr_lightgcn_forward.5} parent=1 // pred_fallthru
      _
    // Predicated region
    $region14: #{lr_lightgcn_forward.5} parent=1 // pred_check
      _
    $region15: #{lr_lightgcn_forward.5} parent=1 // pred_check_branch
      %25 = sbr.rel (0) target = $region17
    $region16: #{lr_lightgcn_forward.5} parent=1 // pred_region
      %26 = dma.done [#allocation4], 16
    $region17: #{lr_lightgcn_forward.5} parent=1 // pred_fallthru
      _
    %27 = sfence
    %v28 = vld [vmem:[%s1] sm:$0xff]
    %v29 = vld [vmem:[%s1 + $0x8] sm:$0xff]
    %v30 = vld [vmem:[%s1 + $0x10] sm:$0xff]
    %v31 = vld [vmem:[%s1 + $0x18] sm:$0xff]
    %v32 = vld [vmem:[%s1 + $0x20] sm:$0xff]
    %v33 = vld [vmem:[%s1 + $0x28] sm:$0xff]
    %v34 = vld [vmem:[%s1 + $0x30] sm:$0xff]
    %v35 = vld [vmem:[%s1 + $0x38] sm:$0xff]
    %v36 = vld [vmem:[%s1 + $0x40] sm:$0xff]
    %v37 = vld [vmem:[%s1 + $0x48] sm:$0xff]
    %v38 = vld [vmem:[%s1 + $0x50] sm:$0xff]
    %v39 = vld [vmem:[%s1 + $0x58] sm:$0xff]
    %v40 = vld [vmem:[%s1 + $0x60] sm:$0xff]
    %v41 = vld [vmem:[%s1 + $0x68] sm:$0xff]
    %v42 = vld [vmem:[%s1 + $0x70] sm:$0xff]
    %v43 = vld [vmem:[%s1 + $0x78] sm:$0xff]
    %v44 = vld [vmem:[%s1 + $0x80] sm:$0xff]
    %v45 = vld [vmem:[%s1 + $0x88] sm:$0xff]
    %v46 = vld [vmem:[%s1 + $0x90] sm:$0xff]
    %v47 = vld [vmem:[%s1 + $0x98] sm:$0xff]
    %v48 = vld [vmem:[%s1 + $0xa0] sm:$0xff]
    %v49 = vld [vmem:[%s1 + $0xa8] sm:$0xff]
    %v50 = vld [vmem:[%s1 + $0xb0] sm:$0xff]
    %v51 = vld [vmem:[%s1 + $0xb8] sm:$0xff]
    %v52 = vld [vmem:[%s1 + $0xc0] sm:$0xff]
    %v53 = vld [vmem:[%s1 + $0xc8] sm:$0xff]
    %v54 = vld [vmem:[%s1 + $0xd0] sm:$0xff]
    %v55 = vld [vmem:[%s1 + $0xd8] sm:$0xff]
    %v56 = vld [vmem:[%s1 + $0xe0] sm:$0xff]
    %v57 = vld [vmem:[%s1 + $0xe8] sm:$0xff]
    %v58 = vld [vmem:[%s1 + $0xf0] sm:$0xff]
    %v59 = vld [vmem:[%s1 + $0xf8] sm:$0xff]
    %v60 = vld [vmem:[%s1 + $0x100] sm:$0xff]
    %v61 = vld [vmem:[%s1 + $0x108] sm:$0xff]
    %v62 = vld [vmem:[%s1 + $0x110] sm:$0xff]
    %v63 = vld [vmem:[%s1 + $0x118] sm:$0xff]
    %v64 = vld [vmem:[%s1 + $0x120] sm:$0xff]
    %v65 = vld [vmem:[%s1 + $0x128] sm:$0xff]
    %v66 = vld [vmem:[%s1 + $0x130] sm:$0xff]
    %v67 = vld [vmem:[%s1 + $0x138] sm:$0xff]
    %v68 = vld [vmem:[%s1 + $0x140] sm:$0xff]
    %v69 = vld [vmem:[%s1 + $0x148] sm:$0xff]
    %v70 = vld [vmem:[%s1 + $0x150] sm:$0xff]
    %v71 = vld [vmem:[%s1 + $0x158] sm:$0xff]
    %v72 = vld [vmem:[%s1 + $0x160] sm:$0xff]
    %v73 = vld [vmem:[%s1 + $0x168] sm:$0xff]
    %v74 = vld [vmem:[%s1 + $0x170] sm:$0xff]
    %v75 = vld [vmem:[%s1 + $0x178] sm:$0xff]
    %v76 = vld [vmem:[%s2] sm:$0xff]
    %v77 = vld [vmem:[%s2 + $0x8] sm:$0xff]
    %v78 = vld [vmem:[%s2 + $0x10] sm:$0xff]
    %v79 = vld [vmem:[%s2 + $0x18] sm:$0xff]
    %v80 = vld [vmem:[%s2 + $0x20] sm:$0xff]
    %v81 = vld [vmem:[%s2 + $0x28] sm:$0xff]
    %v82 = vld [vmem:[%s2 + $0x30] sm:$0xff]
    %v83 = vld [vmem:[%s2 + $0x38] sm:$0xff]
    %v84 = vld [vmem:[%s2 + $0x40] sm:$0xff]
    %v85 = vld [vmem:[%s2 + $0x48] sm:$0xff]
    %v86 = vld [vmem:[%s2 + $0x50] sm:$0xff]
    %v87 = vld [vmem:[%s2 + $0x58] sm:$0xff]
    %v88 = vld [vmem:[%s2 + $0x60] sm:$0xff]
    %v89 = vld [vmem:[%s2 + $0x68] sm:$0xff]
    %v90 = vld [vmem:[%s2 + $0x70] sm:$0xff]
    %v91 = vld [vmem:[%s2 + $0x78] sm:$0xff]
    %v92 = vld [vmem:[%s2 + $0x80] sm:$0xff]
    %v93 = vld [vmem:[%s2 + $0x88] sm:$0xff]
    %v94 = vld [vmem:[%s2 + $0x90] sm:$0xff]
    %v95 = vld [vmem:[%s2 + $0x98] sm:$0xff]
    %v96 = vld [vmem:[%s2 + $0xa0] sm:$0xff]
    %v97 = vld [vmem:[%s2 + $0xa8] sm:$0xff]
    %v98 = vld [vmem:[%s2 + $0xb0] sm:$0xff]
    %v99 = vld [vmem:[%s2 + $0xb8] sm:$0xff]
    %v100 = vld [vmem:[%s2 + $0xc0] sm:$0xff]
    %v101 = vld [vmem:[%s2 + $0xc8] sm:$0xff]
    %v102 = vld [vmem:[%s2 + $0xd0] sm:$0xff]
    %v103 = vld [vmem:[%s2 + $0xd8] sm:$0xff]
    %v104 = vld [vmem:[%s2 + $0xe0] sm:$0xff]
    %v105 = vld [vmem:[%s2 + $0xe8] sm:$0xff]
    %v106 = vld [vmem:[%s2 + $0xf0] sm:$0xff]
    %v107 = vld [vmem:[%s2 + $0xf8] sm:$0xff]
    %v108 = vld [vmem:[%s2 + $0x100] sm:$0xff]
    %v109 = vld [vmem:[%s2 + $0x108] sm:$0xff]
    %v110 = vld [vmem:[%s2 + $0x110] sm:$0xff]
    %v111 = vld [vmem:[%s2 + $0x118] sm:$0xff]
    %v112 = vld [vmem:[%s2 + $0x120] sm:$0xff]
    %v113 = vld [vmem:[%s2 + $0x128] sm:$0xff]
    %v114 = vld [vmem:[%s2 + $0x130] sm:$0xff]
    %v115 = vld [vmem:[%s2 + $0x138] sm:$0xff]
    %v116 = vld [vmem:[%s2 + $0x140] sm:$0xff]
    %v117 = vld [vmem:[%s2 + $0x148] sm:$0xff]
    %v118 = vld [vmem:[%s2 + $0x150] sm:$0xff]
    %v119 = vld [vmem:[%s2 + $0x158] sm:$0xff]
    %v120 = vld [vmem:[%s2 + $0x160] sm:$0xff]
    %v121 = vld [vmem:[%s2 + $0x168] sm:$0xff]
    %v122 = vld [vmem:[%s2 + $0x170] sm:$0xff]
    %v123 = vld [vmem:[%s2 + $0x178] sm:$0xff]
    %v124 = vmul.f32 %v28, %v76
    %v125 = vmul.f32 %v29, %v77
    %v126 = vmul.f32 %v30, %v78
    %v127 = vmul.f32 %v31, %v79
    %v128 = vmul.f32 %v32, %v80
    %v129 = vmul.f32 %v33, %v81
    %v130 = vmul.f32 %v34, %v82
    %v131 = vmul.f32 %v35, %v83
    %v132 = vmul.f32 %v36, %v84
    %v133 = vmul.f32 %v37, %v85
    %v134 = vmul.f32 %v38, %v86
    %v135 = vmul.f32 %v39, %v87
    %v136 = vmul.f32 %v40, %v88
    %v137 = vmul.f32 %v41, %v89
    %v138 = vmul.f32 %v42, %v90
    %v139 = vmul.f32 %v43, %v91
    %v140 = vmul.f32 %v44, %v92
    %v141 = vmul.f32 %v45, %v93
    %v142 = vmul.f32 %v46, %v94
    %v143 = vmul.f32 %v47, %v95
    %v144 = vmul.f32 %v48, %v96
    %v145 = vmul.f32 %v49, %v97
    %v146 = vmul.f32 %v50, %v98
    %v147 = vmul.f32 %v51, %v99
    %v148 = vmul.f32 %v52, %v100
    %v149 = vmul.f32 %v53, %v101
    %v150 = vmul.f32 %v54, %v102
    %v151 = vmul.f32 %v55, %v103
    %v152 = vmul.f32 %v56, %v104
    %v153 = vmul.f32 %v57, %v105
    %v154 = vmul.f32 %v58, %v106
    %v155 = vmul.f32 %v59, %v107
    %v156 = vmul.f32 %v60, %v108
    %v157 = vmul.f32 %v61, %v109
    %v158 = vmul.f32 %v62, %v110
    %v159 = vmul.f32 %v63, %v111
    %v160 = vmul.f32 %v64, %v112
    %v161 = vmul.f32 %v65, %v113
    %v162 = vmul.f32 %v66, %v114
    %v163 = vmul.f32 %v67, %v115
    %v164 = vmul.f32 %v68, %v116
    %v165 = vmul.f32 %v69, %v117
    %v166 = vmul.f32 %v70, %v118
    %v167 = vmul.f32 %v71, %v119
    %v168 = vmul.f32 %v72, %v120
    %v169 = vmul.f32 %v73, %v121
    %v170 = vmul.f32 %v74, %v122
    %v171 = vmul.f32 %v75, %v123
    %172 = vadd.xlane.f32.xlu0 %v124
    %v173 = vpop.xlane.xlu0 %172
    %174 = vadd.xlane.f32.xlu0 %v125
    %v175 = vpop.xlane.xlu0 %174
    %176 = vadd.xlane.f32.xlu0 %v126
    %v177 = vpop.xlane.xlu0 %176
    %178 = vadd.xlane.f32.xlu0 %v127
    %v179 = vpop.xlane.xlu0 %178
    %180 = vadd.xlane.f32.xlu0 %v128
    %v181 = vpop.xlane.xlu0 %180
    %182 = vadd.xlane.f32.xlu0 %v129
    %v183 = vpop.xlane.xlu0 %182
    %184 = vadd.xlane.f32.xlu0 %v130
    %v185 = vpop.xlane.xlu0 %184
    %186 = vadd.xlane.f32.xlu0 %v131
    %v187 = vpop.xlane.xlu0 %186
    %188 = vadd.xlane.f32.xlu0 %v132
    %v189 = vpop.xlane.xlu0 %188
    %190 = vadd.xlane.f32.xlu0 %v133
    %v191 = vpop.xlane.xlu0 %190
    %192 = vadd.xlane.f32.xlu0 %v134
    %v193 = vpop.xlane.xlu0 %192
    %194 = vadd.xlane.f32.xlu0 %v135
    %v195 = vpop.xlane.xlu0 %194
    %196 = vadd.xlane.f32.xlu0 %v136
    %v197 = vpop.xlane.xlu0 %196
    %198 = vadd.xlane.f32.xlu0 %v137
    %v199 = vpop.xlane.xlu0 %198
    %200 = vadd.xlane.f32.xlu0 %v138
    %v201 = vpop.xlane.xlu0 %200
    %202 = vadd.xlane.f32.xlu0 %v139
    %v203 = vpop.xlane.xlu0 %202
    %204 = vadd.xlane.f32.xlu0 %v140
    %v205 = vpop.xlane.xlu0 %204
    %206 = vadd.xlane.f32.xlu0 %v141
    %v207 = vpop.xlane.xlu0 %206
    %208 = vadd.xlane.f32.xlu0 %v142
    %v209 = vpop.xlane.xlu0 %208
    %210 = vadd.xlane.f32.xlu0 %v143
    %v211 = vpop.xlane.xlu0 %210
    %212 = vadd.xlane.f32.xlu0 %v144
    %v213 = vpop.xlane.xlu0 %212
    %214 = vadd.xlane.f32.xlu0 %v145
    %v215 = vpop.xlane.xlu0 %214
    %216 = vadd.xlane.f32.xlu0 %v146
    %v217 = vpop.xlane.xlu0 %216
    %218 = vadd.xlane.f32.xlu0 %v147
    %v219 = vpop.xlane.xlu0 %218
    %220 = vadd.xlane.f32.xlu0 %v148
    %v221 = vpop.xlane.xlu0 %220
    %222 = vadd.xlane.f32.xlu0 %v149
    %v223 = vpop.xlane.xlu0 %222
    %224 = vadd.xlane.f32.xlu0 %v150
    %v225 = vpop.xlane.xlu0 %224
    %226 = vadd.xlane.f32.xlu0 %v151
    %v227 = vpop.xlane.xlu0 %226
    %228 = vadd.xlane.f32.xlu0 %v152
    %v229 = vpop.xlane.xlu0 %228
    %230 = vadd.xlane.f32.xlu0 %v153
    %v231 = vpop.xlane.xlu0 %230
    %232 = vadd.xlane.f32.xlu0 %v154
    %v233 = vpop.xlane.xlu0 %232
    %234 = vadd.xlane.f32.xlu0 %v155
    %v235 = vpop.xlane.xlu0 %234
    %236 = vadd.xlane.f32.xlu0 %v156
    %v237 = vpop.xlane.xlu0 %236
    %238 = vadd.xlane.f32.xlu0 %v157
    %v239 = vpop.xlane.xlu0 %238
    %240 = vadd.xlane.f32.xlu0 %v158
    %v241 = vpop.xlane.xlu0 %240
    %242 = vadd.xlane.f32.xlu0 %v159
    %v243 = vpop.xlane.xlu0 %242
    %244 = vadd.xlane.f32.xlu0 %v160
    %v245 = vpop.xlane.xlu0 %244
    %246 = vadd.xlane.f32.xlu0 %v161
    %v247 = vpop.xlane.xlu0 %246
    %248 = vadd.xlane.f32.xlu0 %v162
    %v249 = vpop.xlane.xlu0 %248
    %250 = vadd.xlane.f32.xlu0 %v163
    %v251 = vpop.xlane.xlu0 %250
    %252 = vadd.xlane.f32.xlu0 %v164
    %v253 = vpop.xlane.xlu0 %252
    %254 = vadd.xlane.f32.xlu0 %v165
    %v255 = vpop.xlane.xlu0 %254
    %256 = vadd.xlane.f32.xlu0 %v166
    %v257 = vpop.xlane.xlu0 %256
    %258 = vadd.xlane.f32.xlu0 %v167
    %v259 = vpop.xlane.xlu0 %258
    %260 = vadd.xlane.f32.xlu0 %v168
    %v261 = vpop.xlane.xlu0 %260
    %262 = vadd.xlane.f32.xlu0 %v169
    %v263 = vpop.xlane.xlu0 %262
    %264 = vadd.xlane.f32.xlu0 %v170
    %v265 = vpop.xlane.xlu0 %264
    %266 = vadd.xlane.f32.xlu0 %v171
    %v267 = vpop.xlane.xlu0 %266
    %s268 = sld [smem:[#allocation2]]
    %v269 = vstv %s268
    %v270 = vmul.f32 %v173, %v269
    %v271 = vmul.f32 %v175, %v269
    %v272 = vmul.f32 %v177, %v269
    %v273 = vmul.f32 %v179, %v269
    %v274 = vmul.f32 %v181, %v269
    %v275 = vmul.f32 %v183, %v269
    %v276 = vmul.f32 %v185, %v269
    %v277 = vmul.f32 %v187, %v269
    %v278 = vmul.f32 %v189, %v269
    %v279 = vmul.f32 %v191, %v269
    %v280 = vmul.f32 %v193, %v269
    %v281 = vmul.f32 %v195, %v269
    %v282 = vmul.f32 %v197, %v269
    %v283 = vmul.f32 %v199, %v269
    %v284 = vmul.f32 %v201, %v269
    %v285 = vmul.f32 %v203, %v269
    %v286 = vadd.f32 %v270, 0.0
    %v287 = vadd.f32 %v271, 0.0
    %v288 = vadd.f32 %v272, 0.0
    %v289 = vadd.f32 %v273, 0.0
    %v290 = vadd.f32 %v274, 0.0
    %v291 = vadd.f32 %v275, 0.0
    %v292 = vadd.f32 %v276, 0.0
    %v293 = vadd.f32 %v277, 0.0
    %v294 = vadd.f32 %v278, 0.0
    %v295 = vadd.f32 %v279, 0.0
    %v296 = vadd.f32 %v280, 0.0
    %v297 = vadd.f32 %v281, 0.0
    %v298 = vadd.f32 %v282, 0.0
    %v299 = vadd.f32 %v283, 0.0
    %v300 = vadd.f32 %v284, 0.0
    %v301 = vadd.f32 %v285, 0.0
    %s302 = sld [smem:[#allocation2 + $0x1]]
    %v303 = vstv %s302
    %v304 = vmul.f32 %v205, %v303
    %v305 = vmul.f32 %v207, %v303
    %v306 = vmul.f32 %v209, %v303
    %v307 = vmul.f32 %v211, %v303
    %v308 = vmul.f32 %v213, %v303
    %v309 = vmul.f32 %v215, %v303
    %v310 = vmul.f32 %v217, %v303
    %v311 = vmul.f32 %v219, %v303
    %v312 = vmul.f32 %v221, %v303
    %v313 = vmul.f32 %v223, %v303
    %v314 = vmul.f32 %v225, %v303
    %v315 = vmul.f32 %v227, %v303
    %v316 = vmul.f32 %v229, %v303
    %v317 = vmul.f32 %v231, %v303
    %v318 = vmul.f32 %v233, %v303
    %v319 = vmul.f32 %v235, %v303
    %v320 = vadd.f32 %v286, %v304
    %v321 = vadd.f32 %v287, %v305
    %v322 = vadd.f32 %v288, %v306
    %v323 = vadd.f32 %v289, %v307
    %v324 = vadd.f32 %v290, %v308
    %v325 = vadd.f32 %v291, %v309
    %v326 = vadd.f32 %v292, %v310
    %v327 = vadd.f32 %v293, %v311
    %v328 = vadd.f32 %v294, %v312
    %v329 = vadd.f32 %v295, %v313
    %v330 = vadd.f32 %v296, %v314
    %v331 = vadd.f32 %v297, %v315
    %v332 = vadd.f32 %v298, %v316
    %v333 = vadd.f32 %v299, %v317
    %v334 = vadd.f32 %v300, %v318
    %v335 = vadd.f32 %v301, %v319
    %s336 = sld [smem:[#allocation2 + $0x2]]
    %v337 = vstv %s336
    %v338 = vmul.f32 %v237, %v337
    %v339 = vmul.f32 %v239, %v337
    %v340 = vmul.f32 %v241, %v337
    %v341 = vmul.f32 %v243, %v337
    %v342 = vmul.f32 %v245, %v337
    %v343 = vmul.f32 %v247, %v337
    %v344 = vmul.f32 %v249, %v337
    %v345 = vmul.f32 %v251, %v337
    %v346 = vmul.f32 %v253, %v337
    %v347 = vmul.f32 %v255, %v337
    %v348 = vmul.f32 %v257, %v337
    %v349 = vmul.f32 %v259, %v337
    %v350 = vmul.f32 %v261, %v337
    %v351 = vmul.f32 %v263, %v337
    %v352 = vmul.f32 %v265, %v337
    %v353 = vmul.f32 %v267, %v337
    %v354 = vadd.f32 %v320, %v338
    %v355 = vadd.f32 %v321, %v339
    %v356 = vadd.f32 %v322, %v340
    %v357 = vadd.f32 %v323, %v341
    %v358 = vadd.f32 %v324, %v342
    %v359 = vadd.f32 %v325, %v343
    %v360 = vadd.f32 %v326, %v344
    %v361 = vadd.f32 %v327, %v345
    %v362 = vadd.f32 %v328, %v346
    %v363 = vadd.f32 %v329, %v347
    %v364 = vadd.f32 %v330, %v348
    %v365 = vadd.f32 %v331, %v349
    %v366 = vadd.f32 %v332, %v350
    %v367 = vadd.f32 %v333, %v351
    %v368 = vadd.f32 %v334, %v352
    %v369 = vadd.f32 %v335, %v353
    %v370 = vxor.u32 %v354, 2147483648
    %v371 = vxor.u32 %v355, 2147483648
    %v372 = vxor.u32 %v356, 2147483648
    %v373 = vxor.u32 %v357, 2147483648
    %v374 = vxor.u32 %v358, 2147483648
    %v375 = vxor.u32 %v359, 2147483648
    %v376 = vxor.u32 %v360, 2147483648
    %v377 = vxor.u32 %v361, 2147483648
    %v378 = vxor.u32 %v362, 2147483648
    %v379 = vxor.u32 %v363, 2147483648
    %v380 = vxor.u32 %v364, 2147483648
    %v381 = vxor.u32 %v365, 2147483648
    %v382 = vxor.u32 %v366, 2147483648
    %v383 = vxor.u32 %v367, 2147483648
    %v384 = vxor.u32 %v368, 2147483648
    %v385 = vxor.u32 %v369, 2147483648
    %v386 = vmul.f32 %v370, 1.442695
    %v387 = vpow.pop %v386
    %v388 = vmul.f32 %v371, 1.442695
    %v389 = vpow.pop %v388
    %v390 = vmul.f32 %v372, 1.442695
    %v391 = vpow.pop %v390
    %v392 = vmul.f32 %v373, 1.442695
    %v393 = vpow.pop %v392
    %v394 = vmul.f32 %v374, 1.442695
    %v395 = vpow.pop %v394
    %v396 = vmul.f32 %v375, 1.442695
    %v397 = vpow.pop %v396
    %v398 = vmul.f32 %v376, 1.442695
    %v399 = vpow.pop %v398
    %v400 = vmul.f32 %v377, 1.442695
    %v401 = vpow.pop %v400
    %v402 = vmul.f32 %v378, 1.442695
    %v403 = vpow.pop %v402
    %v404 = vmul.f32 %v379, 1.442695
    %v405 = vpow.pop %v404
    %v406 = vmul.f32 %v380, 1.442695
    %v407 = vpow.pop %v406
    %v408 = vmul.f32 %v381, 1.442695
    %v409 = vpow.pop %v408
    %v410 = vmul.f32 %v382, 1.442695
    %v411 = vpow.pop %v410
    %v412 = vmul.f32 %v383, 1.442695
    %v413 = vpow.pop %v412
    %v414 = vmul.f32 %v384, 1.442695
    %v415 = vpow.pop %v414
    %v416 = vmul.f32 %v385, 1.442695
    %v417 = vpow.pop %v416
    %v418 = vadd.f32 %v387, 1.0
    %v419 = vadd.f32 %v389, 1.0
    %v420 = vadd.f32 %v391, 1.0
    %v421 = vadd.f32 %v393, 1.0
    %v422 = vadd.f32 %v395, 1.0
    %v423 = vadd.f32 %v397, 1.0
    %v424 = vadd.f32 %v399, 1.0
    %v425 = vadd.f32 %v401, 1.0
    %v426 = vadd.f32 %v403, 1.0
    %v427 = vadd.f32 %v405, 1.0
    %v428 = vadd.f32 %v407, 1.0
    %v429 = vadd.f32 %v409, 1.0
    %v430 = vadd.f32 %v411, 1.0
    %v431 = vadd.f32 %v413, 1.0
    %v432 = vadd.f32 %v415, 1.0
    %v433 = vadd.f32 %v417, 1.0
    %v434 = vrcp.pop %v418
    %v435 = vmul.f32 1.0, %v434
    %v436 = vrcp.pop %v419
    %v437 = vmul.f32 1.0, %v436
    %v438 = vrcp.pop %v420
    %v439 = vmul.f32 1.0, %v438
    %v440 = vrcp.pop %v421
    %v441 = vmul.f32 1.0, %v440
    %v442 = vrcp.pop %v422
    %v443 = vmul.f32 1.0, %v442
    %v444 = vrcp.pop %v423
    %v445 = vmul.f32 1.0, %v444
    %v446 = vrcp.pop %v424
    %v447 = vmul.f32 1.0, %v446
    %v448 = vrcp.pop %v425
    %v449 = vmul.f32 1.0, %v448
    %v450 = vrcp.pop %v426
    %v451 = vmul.f32 1.0, %v450
    %v452 = vrcp.pop %v427
    %v453 = vmul.f32 1.0, %v452
    %v454 = vrcp.pop %v428
    %v455 = vmul.f32 1.0, %v454
    %v456 = vrcp.pop %v429
    %v457 = vmul.f32 1.0, %v456
    %v458 = vrcp.pop %v430
    %v459 = vmul.f32 1.0, %v458
    %v460 = vrcp.pop %v431
    %v461 = vmul.f32 1.0, %v460
    %v462 = vrcp.pop %v432
    %v463 = vmul.f32 1.0, %v462
    %v464 = vrcp.pop %v433
    %v465 = vmul.f32 1.0, %v464
    %v482 = vlaneseq
    %v483 = vand.u32 %v482, 127
    %v484 = vlaneseq
    %v485 = vshrl.u32 %v484, 7
    %v486 = vsub.s32 %v483, %v485
    %v487 = vrot.slane %v435, %v486
    %v488 = vadd.s32 %v483, 4294967288
    %v489 = vlaneseq
    %v490 = vshrl.u32 %v489, 7
    %v491 = vsub.s32 %v488, %v490
    %v492 = vrot.slane %v437, %v491
    %vm493 = vcmask 130112
    %v494 = vsel %vm493, %v492, %v487
    %v495 = vadd.s32 %v483, 4294967280
    %v496 = vlaneseq
    %v497 = vshrl.u32 %v496, 7
    %v498 = vsub.s32 %v495, %v497
    %v499 = vrot.slane %v439, %v498
    %vm500 = vcmask 195712
    %v501 = vsel %vm500, %v499, %v494
    %v502 = vadd.s32 %v483, 4294967272
    %v503 = vlaneseq
    %v504 = vshrl.u32 %v503, 7
    %v505 = vsub.s32 %v502, %v504
    %v506 = vrot.slane %v441, %v505
    %vm507 = vcmask 261312
    %v508 = vsel %vm507, %v506, %v501
    %v509 = vadd.s32 %v483, 4294967264
    %v510 = vlaneseq
    %v511 = vshrl.u32 %v510, 7
    %v512 = vsub.s32 %v509, %v511
    %v513 = vrot.slane %v443, %v512
    %vm514 = vcmask 326912
    %v515 = vsel %vm514, %v513, %v508
    %v516 = vadd.s32 %v483, 4294967256
    %v517 = vlaneseq
    %v518 = vshrl.u32 %v517, 7
    %v519 = vsub.s32 %v516, %v518
    %v520 = vrot.slane %v445, %v519
    %vm521 = vcmask 392512
    %v522 = vsel %vm521, %v520, %v515
    %v523 = vadd.s32 %v483, 4294967248
    %v524 = vlaneseq
    %v525 = vshrl.u32 %v524, 7
    %v526 = vsub.s32 %v523, %v525
    %v527 = vrot.slane %v447, %v526
    %vm528 = vcmask 458112
    %v529 = vsel %vm528, %v527, %v522
    %v530 = vadd.s32 %v483, 4294967240
    %v531 = vlaneseq
    %v532 = vshrl.u32 %v531, 7
    %v533 = vsub.s32 %v530, %v532
    %v534 = vrot.slane %v449, %v533
    %vm535 = vcmask 523712
    %v536 = vsel %vm535, %v534, %v529
    %v537 = vadd.s32 %v483, 4294967232
    %v538 = vlaneseq
    %v539 = vshrl.u32 %v538, 7
    %v540 = vsub.s32 %v537, %v539
    %v541 = vrot.slane %v451, %v540
    %vm542 = vcmask 589312
    %v543 = vsel %vm542, %v541, %v536
    %v544 = vadd.s32 %v483, 4294967224
    %v545 = vlaneseq
    %v546 = vshrl.u32 %v545, 7
    %v547 = vsub.s32 %v544, %v546
    %v548 = vrot.slane %v453, %v547
    %vm549 = vcmask 654912
    %v550 = vsel %vm549, %v548, %v543
    %v551 = vadd.s32 %v483, 4294967216
    %v552 = vlaneseq
    %v553 = vshrl.u32 %v552, 7
    %v554 = vsub.s32 %v551, %v553
    %v555 = vrot.slane %v455, %v554
    %vm556 = vcmask 720512
    %v557 = vsel %vm556, %v555, %v550
    %v558 = vadd.s32 %v483, 4294967208
    %v559 = vlaneseq
    %v560 = vshrl.u32 %v559, 7
    %v561 = vsub.s32 %v558, %v560
    %v562 = vrot.slane %v457, %v561
    %vm563 = vcmask 786112
    %v564 = vsel %vm563, %v562, %v557
    %v565 = vadd.s32 %v483, 4294967200
    %v566 = vlaneseq
    %v567 = vshrl.u32 %v566, 7
    %v568 = vsub.s32 %v565, %v567
    %v569 = vrot.slane %v459, %v568
    %vm570 = vcmask 851712
    %v571 = vsel %vm570, %v569, %v564
    %v572 = vadd.s32 %v483, 4294967192
    %v573 = vlaneseq
    %v574 = vshrl.u32 %v573, 7
    %v575 = vsub.s32 %v572, %v574
    %v576 = vrot.slane %v461, %v575
    %vm577 = vcmask 917312
    %v578 = vsel %vm577, %v576, %v571
    %v579 = vadd.s32 %v483, 4294967184
    %v580 = vlaneseq
    %v581 = vshrl.u32 %v580, 7
    %v582 = vsub.s32 %v579, %v581
    %v583 = vrot.slane %v463, %v582
    %vm584 = vcmask 982912
    %v585 = vsel %vm584, %v583, %v578
    %v586 = vadd.s32 %v483, 4294967176
    %v587 = vlaneseq
    %v588 = vshrl.u32 %v587, 7
    %v589 = vsub.s32 %v586, %v588
    %v590 = vrot.slane %v465, %v589
    %vm591 = vcmask 1048512
    %v592 = vsel %vm591, %v590, %v585
    %594 = vst [vmem:[#allocation5] sm:$0x1] %v592
    // Predicated region
    $region18: #{lr_lightgcn_forward.5} parent=1 // pred_check
      _
    $region19: #{lr_lightgcn_forward.5} parent=1 // pred_check_branch
      %596 = sbr.rel (0) target = $region21
    $region20: #{lr_lightgcn_forward.5} parent=1 // pred_region
      %s598 = ssub.s32 16, 16
      %599 = vsyncadd [#allocation3], %s598
      %s601 = sshll.u32 [#allocation5], 4
      %s602 = int_to_ptr.vmem [resolvable:$true] %s601
      %604 = dma.vmem_to_hbm [thread:$0]  %s602, 16, %s3, [#allocation3]
    $region21: #{lr_lightgcn_forward.5} parent=1 // pred_fallthru
      _
    // Predicated region
    $region22: #{lr_lightgcn_forward.5} parent=1 // pred_check
      _
    $region23: #{lr_lightgcn_forward.5} parent=1 // pred_check_branch
      %606 = sbr.rel (0) target = $region25
    $region24: #{lr_lightgcn_forward.5} parent=1 // pred_region
      %607 = dma.done [#allocation3], 16
    $region25: #{lr_lightgcn_forward.5} parent=1 // pred_fallthru
      _
    %608 = vsyncpa [#allocation3], 1
    %609 = vsyncpa [#allocation4], 1

</llo_original>
